<compile_context>
chip_gen: v6e
topology: v6e:2x2x1
jax: 0.10.0
libtpu: 0.0.40
codegen_flags: <defaults>
</compile_context>

<pallas_src>
import jax
import jax.numpy as jnp
from jax.experimental import pallas as pl
from jax.experimental.pallas import tpu as pltpu

NEG_INF = -1e9
F32 = jnp.float32
BF16 = jnp.bfloat16


def _softmax_lastdim(logits):
    """Numerically-stable softmax over the last dim; reciprocal on the EUP."""
    m = jnp.max(logits, axis=-1, keepdims=True)
    e = jnp.exp(logits - m)
    return e * pl.reciprocal(jnp.sum(e, axis=-1, keepdims=True), approx=True)


def multi_re_kernel(img_in, txt_in, xb_ref, yb_ref,
                    wi_ref, bi_ref, wt_ref, bt_ref,
                    wi1_ref, bi1_ref, wt1_ref, bt1_ref,
                    img_out, txt_out):
    blk = pl.program_id(1)

    # Block 0: initialize the resident activation state from the inputs.
    @pl.when(blk == 0)
    def _():
        img_out[...] = img_in[...]
        txt_out[...] = txt_in[...]

    G, Nx, D = img_out.shape
    Ny = txt_out.shape[1]

    # Current activation state (resident in the output VMEM blocks), f32.
    img = img_out[...].reshape(G * Nx, D)
    txt = txt_out[...].reshape(G * Ny, D)
    img_b = img.astype(BF16)
    txt_b = txt.astype(BF16)

    # This block's parameters (weights bf16 for the MXU, biases f32).
    wi = wi_ref[0].astype(BF16)
    wt = wt_ref[0].astype(BF16)
    wi1 = wi1_ref[0].astype(BF16)
    wt1 = wt1_ref[0].astype(BF16)
    bi, bt, bi1, bt1 = bi_ref[0], bt_ref[0], bi1_ref[0], bt1_ref[0]   # (1, D)

    # linear_img / linear_txt, batched over all G*N rows (one matmul per weight).
    x = jnp.dot(img_b, wi, preferred_element_type=F32) + bi          # (G*Nx, D)
    y = jnp.dot(txt_b, wt, preferred_element_type=F32) + bt          # (G*Ny, D)

    x_bias = xb_ref[...]                                             # (G, 1, Nx)
    y_bias = yb_ref[...]                                             # (G, 1, Ny)

    att_x_parts = []
    att_y_parts = []
    for g in range(G):                      # static unroll over (b,h) cells
        x_g = x[g * Nx:(g + 1) * Nx]        # (Nx, D) f32
        y_g = y[g * Ny:(g + 1) * Ny]        # (Ny, D) f32

        # cosine-style normalized attention: att = (x @ y^T) / clamp(|x||y|, 1e-8)
        att = jnp.einsum('nd,md->nm', x_g.astype(BF16), y_g.astype(BF16),
                         preferred_element_type=F32)                 # (Nx, Ny)
        wx = jnp.sqrt(jnp.sum(x_g * x_g, axis=-1, keepdims=True))    # (Nx, 1)
        wy = jnp.sqrt(jnp.sum(y_g * y_g, axis=-1, keepdims=True)).T  # (1, Ny)
        att = att * pl.reciprocal(jnp.maximum(wx * wy, 1e-8), approx=True)

        # image attends to text (dropout1: identity, eval mode)
        p1 = _softmax_lastdim(att + y_bias[g])                       # (Nx, Ny)
        att_x_parts.append(
            jnp.dot(p1.astype(BF16), txt[g * Ny:(g + 1) * Ny].astype(BF16),
                    preferred_element_type=F32))                     # (Nx, D)

        # text attends to image (dropout2: identity, eval mode)
        p2 = _softmax_lastdim(att.T + x_bias[g])                     # (Ny, Nx)
        att_y_parts.append(
            jnp.dot(p2.astype(BF16), img[g * Nx:(g + 1) * Nx].astype(BF16),
                    preferred_element_type=F32))                     # (Ny, D)

    att_x = jnp.concatenate(att_x_parts, axis=0)                     # (G*Nx, D)
    att_y = jnp.concatenate(att_y_parts, axis=0)                     # (G*Ny, D)

    # gating + output projections, again batched over all rows.
    gx = jax.nn.sigmoid(att_x * img) * att_x
    gy = jax.nn.sigmoid(att_y * txt) * att_y
    fuse_x = jnp.dot(gx.astype(BF16), wi1, preferred_element_type=F32) + bi1
    fuse_y = jnp.dot(gy.astype(BF16), wt1, preferred_element_type=F32) + bt1

    # residual update of the resident state (written back to HBM once, after the
    # last block of this group).
    img_out[...] = (fuse_x + img).reshape(G, Nx, D).astype(img_out.dtype)
    txt_out[...] = (fuse_y + txt).reshape(G, Ny, D).astype(txt_out.dtype)


def multi_re_forward(imgE, txtE, x_mask, y_mask, block_params, group_size=None):
    """Fused Multi_re forward. imgE:[B,H,Nx,D], txtE:[B,H,Ny,D], masks:[B,1,1,N]."""
    B, H, Nx, D = imgE.shape
    Ny = txtE.shape[2]
    BH = B * H
    L = len(block_params)

    # group_size = (b,h) cells processed per grid step.  Default: all cells in
    # one group (max MXU batching).  For v7x 2-TC occupancy use group_size<=BH/2.
    G = BH if group_size is None else group_size
    assert BH % G == 0
    n_groups = BH // G

    img = imgE.reshape(BH, Nx, D)
    txt = txtE.reshape(BH, Ny, D)

    # Precompute additive mask biases once (mask * -1e9), broadcast over heads.
    xb = jnp.where(x_mask != 0, NEG_INF, 0.0).astype(F32)            # (B,1,1,Nx)
    yb = jnp.where(y_mask != 0, NEG_INF, 0.0).astype(F32)            # (B,1,1,Ny)
    xb = jnp.broadcast_to(xb, (B, H, 1, Nx)).reshape(BH, 1, Nx)
    yb = jnp.broadcast_to(yb, (B, H, 1, Ny)).reshape(BH, 1, Ny)

    # Stack per-block parameters along a leading block axis.
    stk = lambda i: jnp.stack([p[i] for p in block_params])
    Wi, Bi, Wt, Bt, Wi1, Bi1, Wt1, Bt1 = (stk(i) for i in range(8))
    # shapes: W*: (L, D, D), B*: (L, 1, D)

    act_spec = lambda n: pl.BlockSpec((G, n, D), lambda g, blk: (g, 0, 0))
    msk_spec = lambda n: pl.BlockSpec((G, 1, n), lambda g, blk: (g, 0, 0))
    w_spec = pl.BlockSpec((1, D, D), lambda g, blk: (blk, 0, 0))
    b_spec = pl.BlockSpec((1, 1, D), lambda g, blk: (blk, 0, 0))

    img_o, txt_o = pl.pallas_call(
        multi_re_kernel,
        out_shape=(jax.ShapeDtypeStruct((BH, Nx, D), imgE.dtype),
                   jax.ShapeDtypeStruct((BH, Ny, D), txtE.dtype)),
        grid=(n_groups, L),
        in_specs=[act_spec(Nx), act_spec(Ny), msk_spec(Nx), msk_spec(Ny),
                  w_spec, b_spec, w_spec, b_spec,
                  w_spec, b_spec, w_spec, b_spec],
        out_specs=(act_spec(Nx), act_spec(Ny)),
        compiler_params=pltpu.CompilerParams(
            dimension_semantics=("parallel", "arbitrary")),
    )(img, txt, xb, yb, Wi, Bi, Wt, Bt, Wi1, Bi1, Wt1, Bt1)

    return img_o.reshape(B, H, Nx, D), txt_o.reshape(B, H, Ny, D)


# ---------------- parameter init (deterministic, nn.Linear-like) ----------------
def _init_linear(key, d):
    k1, k2 = jax.random.split(key)
    bound = 1.0 / float(d) ** 0.5
    W = jax.random.uniform(k1, (d, d), F32, -bound, bound)   # (out, in)
    b = jax.random.uniform(k2, (1, d), F32, -bound, bound)
    return W.T, b   # pre-transpose so the kernel computes x @ W^T as x @ Wt


def init_fuse_params(key, d):
    keys = jax.random.split(key, 4)
    wi, bi = _init_linear(keys[0], d)     # linear_img
    wt, bt = _init_linear(keys[1], d)     # linear_txt
    wi1, bi1 = _init_linear(keys[2], d)   # linear_img1
    wt1, bt1 = _init_linear(keys[3], d)   # linear_txt1
    return (wi, bi, wt, bt, wi1, bi1, wt1, bt1)


# ---------------- pure-JAX reference (mirrors the kernel's precision policy:
# bf16 matmul operands, f32 accumulation / softmax / residuals) ----------------
def fuse_ref(imgE, txtE, x_mask, y_mask, params):
    wi, bi, wt, bt, wi1, bi1, wt1, bt1 = params
    b16 = lambda a: a.astype(BF16)
    xb = jnp.where(x_mask != 0, NEG_INF, 0.0).astype(F32)
    yb = jnp.where(y_mask != 0, NEG_INF, 0.0).astype(F32)

    x = jnp.einsum('bhnd,de->bhne', b16(imgE), b16(wi),
                   preferred_element_type=F32) + bi
    y = jnp.einsum('bhnd,de->bhne', b16(txtE), b16(wt),
                   preferred_element_type=F32) + bt
    att = jnp.einsum('bhnd,bhmd->bhnm', b16(x), b16(y),
                     preferred_element_type=F32)
    wx = jnp.sqrt(jnp.sum(x * x, -1, keepdims=True))
    wy = jnp.sqrt(jnp.sum(y * y, -1, keepdims=True)).swapaxes(2, 3)
    att = att / jnp.maximum(wx * wy, 1e-8)

    p1 = jax.nn.softmax(att + yb, axis=-1)
    att_x = jnp.einsum('bhnm,bhmd->bhnd', b16(p1), b16(txtE),
                       preferred_element_type=F32)
    gx = jax.nn.sigmoid(att_x * imgE) * att_x
    img_out = jnp.einsum('bhnd,de->bhne', b16(gx), b16(wi1),
                         preferred_element_type=F32) + bi1 + imgE

    p2 = jax.nn.softmax(att.swapaxes(2, 3) + xb, axis=-1)
    att_y = jnp.einsum('bhmn,bhnd->bhmd', b16(p2), b16(imgE),
                       preferred_element_type=F32)
    gy = jax.nn.sigmoid(att_y * txtE) * att_y
    txt_out = jnp.einsum('bhmd,de->bhme', b16(gy), b16(wt1),
                         preferred_element_type=F32) + bt1 + txtE
    return img_out, txt_out


if __name__ == "__main__":
    B, H, Nx, Ny, D = 2, 1, 8, 8, 32
    n_res_blocks = 2

    key = jax.random.PRNGKey(0)
    k_img, k_txt, k_params = jax.random.split(key, 3)

    imgE = jax.random.normal(k_img, (B, H, Nx, D), F32)
    txtE = jax.random.normal(k_txt, (B, H, Ny, D), F32)

    # padding masks: nonzero == masked position
    img_lens = jnp.array([Nx, 5], jnp.int32)
    txt_lens = jnp.array([Ny, 6], jnp.int32)
    x_mask = (jnp.arange(Nx)[None, :] >= img_lens[:, None]).astype(jnp.int32)
    y_mask = (jnp.arange(Ny)[None, :] >= txt_lens[:, None]).astype(jnp.int32)
    x_mask = x_mask.reshape(B, 1, 1, Nx)
    y_mask = y_mask.reshape(B, 1, 1, Ny)

    block_keys = jax.random.split(k_params, n_res_blocks)
    block_params = [init_fuse_params(k, D) for k in block_keys]

    out_img, out_txt = multi_re_forward(imgE, txtE, x_mask, y_mask, block_params)
    out_img, out_txt = jax.block_until_ready((out_img, out_txt))

    # self-check against pure-JAX reference (same bf16-MXU / f32-accumulate policy;
    # tolerance covers the approx EUP reciprocal and cross-block rounding drift)
    ref_img, ref_txt = imgE, txtE
    for p in block_params:
        ref_img, ref_txt = fuse_ref(ref_img, ref_txt, x_mask, y_mask, p)
    assert jnp.allclose(out_img, ref_img, atol=2e-2, rtol=2e-2), (
        "img mismatch, max |diff| = %s" % jnp.max(jnp.abs(out_img - ref_img)))
    assert jnp.allclose(out_txt, ref_txt, atol=2e-2, rtol=2e-2), (
        "txt mismatch, max |diff| = %s" % jnp.max(jnp.abs(out_txt - ref_txt)))

    # TODO(synk): at production D (>=128) pad/pack the hidden dim lane-dense and
    # tile Nx with an online softmax (and set vmem_limit_bytes) for v7x's 64 MiB VMEM.
    print("KERNEL_OK")
</pallas_src>

<mosaic_0001>
module attributes {stable_mosaic.version = 11 : i64} {
  func.func @multi_re_kernel(%arg0: i32, %arg1: i32, %arg2: memref<2x8x32xf32, #tpu.memory_space<vmem>>, %arg3: memref<2x8x32xf32, #tpu.memory_space<vmem>>, %arg4: memref<2x1x8xf32, #tpu.memory_space<vmem>>, %arg5: memref<2x1x8xf32, #tpu.memory_space<vmem>>, %arg6: memref<1x32x32xf32, #tpu.memory_space<vmem>>, %arg7: memref<1x1x32xf32, #tpu.memory_space<vmem>>, %arg8: memref<1x32x32xf32, #tpu.memory_space<vmem>>, %arg9: memref<1x1x32xf32, #tpu.memory_space<vmem>>, %arg10: memref<1x32x32xf32, #tpu.memory_space<vmem>>, %arg11: memref<1x1x32xf32, #tpu.memory_space<vmem>>, %arg12: memref<1x32x32xf32, #tpu.memory_space<vmem>>, %arg13: memref<1x1x32xf32, #tpu.memory_space<vmem>>, %arg14: memref<2x8x32xf32, #tpu.memory_space<vmem>>, %arg15: memref<2x8x32xf32, #tpu.memory_space<vmem>>) attributes {dimension_semantics = [#tpu.dimension_semantics<parallel>, #tpu.dimension_semantics<arbitrary>], iteration_bounds = array<i64: 1, 2>, scalar_prefetch = 0 : i64, scratch_operands = 0 : i64, tpu.core_type = #tpu.core_type<tc>, window_params = [{transform_indices = @transform_0, window_bounds = array<i64: 2, 8, 32>}, {transform_indices = @transform_1, window_bounds = array<i64: 2, 8, 32>}, {transform_indices = @transform_2, window_bounds = array<i64: 2, 1, 8>}, {transform_indices = @transform_3, window_bounds = array<i64: 2, 1, 8>}, {transform_indices = @transform_4, window_bounds = array<i64: 1, 32, 32>}, {transform_indices = @transform_5, window_bounds = array<i64: 1, 1, 32>}, {transform_indices = @transform_6, window_bounds = array<i64: 1, 32, 32>}, {transform_indices = @transform_7, window_bounds = array<i64: 1, 1, 32>}, {transform_indices = @transform_8, window_bounds = array<i64: 1, 32, 32>}, {transform_indices = @transform_9, window_bounds = array<i64: 1, 1, 32>}, {transform_indices = @transform_10, window_bounds = array<i64: 1, 32, 32>}, {transform_indices = @transform_11, window_bounds = array<i64: 1, 1, 32>}, {transform_indices = @transform_12, window_bounds = array<i64: 2, 8, 32>}, {transform_indices = @transform_13, window_bounds = array<i64: 2, 8, 32>}]} {
    %c0_i32 = arith.constant 0 : i32
    %0 = arith.cmpi eq, %arg1, %c0_i32 : i32
    %1 = arith.extui %0 : i1 to i32
    %c0_i32_0 = arith.constant 0 : i32
    %2 = arith.cmpi ne, %1, %c0_i32_0 : i32
    scf.if %2 {
      %c0_67 = arith.constant 0 : index
      %c0_68 = arith.constant 0 : index
      %c0_69 = arith.constant 0 : index
      %183 = vector.load %arg2[%c0_67, %c0_68, %c0_69] : memref<2x8x32xf32, #tpu.memory_space<vmem>>, vector<2x8x32xf32>
      %c0_70 = arith.constant 0 : index
      %c0_71 = arith.constant 0 : index
      %c0_72 = arith.constant 0 : index
      %184 = vector.load %arg14[%c0_70, %c0_71, %c0_72] : memref<2x8x32xf32, #tpu.memory_space<vmem>>, vector<2x8x32xf32>
      tpu.vector_store %arg14[%c0_70, %c0_71, %c0_72], %183 {strides = array<i32>} : memref<2x8x32xf32, #tpu.memory_space<vmem>>, vector<2x8x32xf32>,
      %c0_73 = arith.constant 0 : index
      %c0_74 = arith.constant 0 : index
      %c0_75 = arith.constant 0 : index
      %185 = vector.load %arg3[%c0_73, %c0_74, %c0_75] : memref<2x8x32xf32, #tpu.memory_space<vmem>>, vector<2x8x32xf32>
      %c0_76 = arith.constant 0 : index
      %c0_77 = arith.constant 0 : index
      %c0_78 = arith.constant 0 : index
      %186 = vector.load %arg15[%c0_76, %c0_77, %c0_78] : memref<2x8x32xf32, #tpu.memory_space<vmem>>, vector<2x8x32xf32>
      tpu.vector_store %arg15[%c0_76, %c0_77, %c0_78], %185 {strides = array<i32>} : memref<2x8x32xf32, #tpu.memory_space<vmem>>, vector<2x8x32xf32>,
    } else {
    }
    %c0 = arith.constant 0 : index
    %c0_1 = arith.constant 0 : index
    %c0_2 = arith.constant 0 : index
    %3 = vector.load %arg14[%c0, %c0_1, %c0_2] : memref<2x8x32xf32, #tpu.memory_space<vmem>>, vector<2x8x32xf32>
    %4 = vector.shape_cast %3 : vector<2x8x32xf32> to vector<16x32xf32>
    %c0_3 = arith.constant 0 : index
    %c0_4 = arith.constant 0 : index
    %c0_5 = arith.constant 0 : index
    %5 = vector.load %arg15[%c0_3, %c0_4, %c0_5] : memref<2x8x32xf32, #tpu.memory_space<vmem>>, vector<2x8x32xf32>
    %6 = vector.shape_cast %5 : vector<2x8x32xf32> to vector<16x32xf32>
    %7 = arith.truncf %4 : vector<16x32xf32> to vector<16x32xbf16>
    %8 = arith.truncf %6 : vector<16x32xf32> to vector<16x32xbf16>
    %c0_6 = arith.constant 0 : index
    %c0_7 = arith.constant 0 : index
    %c0_8 = arith.constant 0 : index
    %9 = vector.load %arg6[%c0_6, %c0_7, %c0_8] : memref<1x32x32xf32, #tpu.memory_space<vmem>>, vector<1x32x32xf32>
    %10 = vector.shape_cast %9 : vector<1x32x32xf32> to vector<32x32xf32>
    %11 = arith.truncf %10 : vector<32x32xf32> to vector<32x32xbf16>
    %c0_9 = arith.constant 0 : index
    %c0_10 = arith.constant 0 : index
    %c0_11 = arith.constant 0 : index
    %12 = vector.load %arg8[%c0_9, %c0_10, %c0_11] : memref<1x32x32xf32, #tpu.memory_space<vmem>>, vector<1x32x32xf32>
    %13 = vector.shape_cast %12 : vector<1x32x32xf32> to vector<32x32xf32>
    %14 = arith.truncf %13 : vector<32x32xf32> to vector<32x32xbf16>
    %c0_12 = arith.constant 0 : index
    %c0_13 = arith.constant 0 : index
    %c0_14 = arith.constant 0 : index
    %15 = vector.load %arg10[%c0_12, %c0_13, %c0_14] : memref<1x32x32xf32, #tpu.memory_space<vmem>>, vector<1x32x32xf32>
    %16 = vector.shape_cast %15 : vector<1x32x32xf32> to vector<32x32xf32>
    %17 = arith.truncf %16 : vector<32x32xf32> to vector<32x32xbf16>
    %c0_15 = arith.constant 0 : index
    %c0_16 = arith.constant 0 : index
    %c0_17 = arith.constant 0 : index
    %18 = vector.load %arg12[%c0_15, %c0_16, %c0_17] : memref<1x32x32xf32, #tpu.memory_space<vmem>>, vector<1x32x32xf32>
    %19 = vector.shape_cast %18 : vector<1x32x32xf32> to vector<32x32xf32>
    %20 = arith.truncf %19 : vector<32x32xf32> to vector<32x32xbf16>
    %c0_18 = arith.constant 0 : index
    %c0_19 = arith.constant 0 : index
    %c0_20 = arith.constant 0 : index
    %21 = vector.load %arg7[%c0_18, %c0_19, %c0_20] : memref<1x1x32xf32, #tpu.memory_space<vmem>>, vector<1x1x32xf32>
    %22 = vector.shape_cast %21 : vector<1x1x32xf32> to vector<1x32xf32>
    %c0_21 = arith.constant 0 : index
    %c0_22 = arith.constant 0 : index
    %c0_23 = arith.constant 0 : index
    %23 = vector.load %arg9[%c0_21, %c0_22, %c0_23] : memref<1x1x32xf32, #tpu.memory_space<vmem>>, vector<1x1x32xf32>
    %24 = vector.shape_cast %23 : vector<1x1x32xf32> to vector<1x32xf32>
    %c0_24 = arith.constant 0 : index
    %c0_25 = arith.constant 0 : index
    %c0_26 = arith.constant 0 : index
    %25 = vector.load %arg11[%c0_24, %c0_25, %c0_26] : memref<1x1x32xf32, #tpu.memory_space<vmem>>, vector<1x1x32xf32>
    %26 = vector.shape_cast %25 : vector<1x1x32xf32> to vector<1x32xf32>
    %c0_27 = arith.constant 0 : index
    %c0_28 = arith.constant 0 : index
    %c0_29 = arith.constant 0 : index
    %27 = vector.load %arg13[%c0_27, %c0_28, %c0_29] : memref<1x1x32xf32, #tpu.memory_space<vmem>>, vector<1x1x32xf32>
    %28 = vector.shape_cast %27 : vector<1x1x32xf32> to vector<1x32xf32>
    %cst = arith.constant dense<0.000000e+00> : vector<16x32xf32>
    %29 = tpu.matmul %7, %11, %cst {dimension_numbers = #tpu.dot_dimension_numbers<[1], [0], [0], [1], [0, 0, 1, 1], [], []>} : vector<16x32xbf16>, vector<32x32xbf16>, vector<16x32xf32> -> vector<16x32xf32>
    %30 = vector.broadcast %22 : vector<1x32xf32> to vector<16x32xf32>
    %31 = arith.addf %29, %30 : vector<16x32xf32>
    %cst_30 = arith.constant dense<0.000000e+00> : vector<16x32xf32>
    %32 = tpu.matmul %8, %14, %cst_30 {dimension_numbers = #tpu.dot_dimension_numbers<[1], [0], [0], [1], [0, 0, 1, 1], [], []>} : vector<16x32xbf16>, vector<32x32xbf16>, vector<16x32xf32> -> vector<16x32xf32>
    %33 = vector.broadcast %24 : vector<1x32xf32> to vector<16x32xf32>
    %34 = arith.addf %32, %33 : vector<16x32xf32>
    %c0_31 = arith.constant 0 : index
    %c0_32 = arith.constant 0 : index
    %c0_33 = arith.constant 0 : index
    %35 = vector.load %arg4[%c0_31, %c0_32, %c0_33] : memref<2x1x8xf32, #tpu.memory_space<vmem>>, vector<2x1x8xf32>
    %c0_34 = arith.constant 0 : index
    %c0_35 = arith.constant 0 : index
    %c0_36 = arith.constant 0 : index
    %36 = vector.load %arg5[%c0_34, %c0_35, %c0_36] : memref<2x1x8xf32, #tpu.memory_space<vmem>>, vector<2x1x8xf32>
    %37 = vector.extract_strided_slice %31 {offsets = [0, 0], sizes = [8, 32], strides = [1, 1]} : vector<16x32xf32> to vector<8x32xf32>
    %38 = vector.extract_strided_slice %34 {offsets = [0, 0], sizes = [8, 32], strides = [1, 1]} : vector<16x32xf32> to vector<8x32xf32>
    %39 = arith.truncf %37 : vector<8x32xf32> to vector<8x32xbf16>
    %40 = arith.truncf %38 : vector<8x32xf32> to vector<8x32xbf16>
    "tpu.trace_start"() <{level = 10 : i32, message = "nd,md->nm"}> : () -> ()
    %cst_37 = arith.constant dense<0.000000e+00> : vector<8x8xf32>
    %41 = tpu.matmul %39, %40, %cst_37 {dimension_numbers = #tpu.dot_dimension_numbers<[1], [1], [0], [0], [0, 0, 1, 0], [], []>} : vector<8x32xbf16>, vector<8x32xbf16>, vector<8x8xf32> -> vector<8x8xf32>
    "tpu.trace_stop"() : () -> ()
    %42 = arith.mulf %37, %37 : vector<8x32xf32>
    %cst_38 = arith.constant dense<0.000000e+00> : vector<8xf32>
    %43 = vector.multi_reduction <add>, %42, %cst_38 [1] : vector<8x32xf32> to vector<8xf32>
    %44 = vector.shape_cast %43 : vector<8xf32> to vector<8x1xf32>
    %45 = math.sqrt %44 : vector<8x1xf32>
    %46 = arith.mulf %38, %38 : vector<8x32xf32>
    %cst_39 = arith.constant dense<0.000000e+00> : vector<8xf32>
    %47 = vector.multi_reduction <add>, %46, %cst_39 [1] : vector<8x32xf32> to vector<8xf32>
    %48 = vector.shape_cast %47 : vector<8xf32> to vector<8x1xf32>
    %49 = math.sqrt %48 : vector<8x1xf32>
    %50 = tpu.transpose %49, [1, 0] : vector<8x1xf32> -> vector<1x8xf32>
    %51 = vector.broadcast %45 : vector<8x1xf32> to vector<8x8xf32>
    %52 = vector.broadcast %50 : vector<1x8xf32> to vector<8x8xf32>
    %53 = arith.mulf %51, %52 : vector<8x8xf32>
    %cst_40 = arith.constant 9.99999993E-9 : f32
    %54 = vector.broadcast %cst_40 : f32 to vector<8x8xf32>
    %55 = arith.maximumf %53, %54 : vector<8x8xf32>
    %56 = tpu.reciprocal %55 {approx = true} : vector<8x8xf32> -> vector<8x8xf32>
    %57 = arith.mulf %41, %56 : vector<8x8xf32>
    %58 = vector.extract_strided_slice %36 {offsets = [0, 0, 0], sizes = [1, 1, 8], strides = [1, 1, 1]} : vector<2x1x8xf32> to vector<1x1x8xf32>
    %59 = vector.shape_cast %58 : vector<1x1x8xf32> to vector<1x8xf32>
    %60 = vector.broadcast %59 : vector<1x8xf32> to vector<8x8xf32>
    %61 = arith.addf %57, %60 : vector<8x8xf32>
    %cst_41 = arith.constant dense<0xFF800000> : vector<8xf32>
    %62 = vector.multi_reduction <maximumf>, %61, %cst_41 [1] : vector<8x8xf32> to vector<8xf32>
    %63 = vector.shape_cast %62 : vector<8xf32> to vector<8x1xf32>
    %64 = vector.broadcast %63 : vector<8x1xf32> to vector<8x8xf32>
    %65 = arith.subf %61, %64 : vector<8x8xf32>
    %66 = math.exp %65 : vector<8x8xf32>
    %cst_42 = arith.constant dense<0.000000e+00> : vector<8xf32>
    %67 = vector.multi_reduction <add>, %66, %cst_42 [1] : vector<8x8xf32> to vector<8xf32>
    %68 = vector.shape_cast %67 : vector<8xf32> to vector<8x1xf32>
    %69 = tpu.reciprocal %68 {approx = true} : vector<8x1xf32> -> vector<8x1xf32>
    %70 = vector.broadcast %69 : vector<8x1xf32> to vector<8x8xf32>
    %71 = arith.mulf %66, %70 : vector<8x8xf32>
    %72 = arith.truncf %71 : vector<8x8xf32> to vector<8x8xbf16>
    %73 = vector.extract_strided_slice %6 {offsets = [0, 0], sizes = [8, 32], strides = [1, 1]} : vector<16x32xf32> to vector<8x32xf32>
    %74 = arith.truncf %73 : vector<8x32xf32> to vector<8x32xbf16>
    %cst_43 = arith.constant dense<0.000000e+00> : vector<8x32xf32>
    %75 = tpu.matmul %72, %74, %cst_43 {dimension_numbers = #tpu.dot_dimension_numbers<[1], [0], [0], [1], [0, 0, 1, 1], [], []>} : vector<8x8xbf16>, vector<8x32xbf16>, vector<8x32xf32> -> vector<8x32xf32>
    %76 = tpu.transpose %57, [1, 0] : vector<8x8xf32> -> vector<8x8xf32>
    %77 = vector.extract_strided_slice %35 {offsets = [0, 0, 0], sizes = [1, 1, 8], strides = [1, 1, 1]} : vector<2x1x8xf32> to vector<1x1x8xf32>
    %78 = vector.shape_cast %77 : vector<1x1x8xf32> to vector<1x8xf32>
    %79 = vector.broadcast %78 : vector<1x8xf32> to vector<8x8xf32>
    %80 = arith.addf %76, %79 : vector<8x8xf32>
    %cst_44 = arith.constant dense<0xFF800000> : vector<8xf32>
    %81 = vector.multi_reduction <maximumf>, %80, %cst_44 [1] : vector<8x8xf32> to vector<8xf32>
    %82 = vector.shape_cast %81 : vector<8xf32> to vector<8x1xf32>
    %83 = vector.broadcast %82 : vector<8x1xf32> to vector<8x8xf32>
    %84 = arith.subf %80, %83 : vector<8x8xf32>
    %85 = math.exp %84 : vector<8x8xf32>
    %cst_45 = arith.constant dense<0.000000e+00> : vector<8xf32>
    %86 = vector.multi_reduction <add>, %85, %cst_45 [1] : vector<8x8xf32> to vector<8xf32>
    %87 = vector.shape_cast %86 : vector<8xf32> to vector<8x1xf32>
    %88 = tpu.reciprocal %87 {approx = true} : vector<8x1xf32> -> vector<8x1xf32>
    %89 = vector.broadcast %88 : vector<8x1xf32> to vector<8x8xf32>
    %90 = arith.mulf %85, %89 : vector<8x8xf32>
    %91 = arith.truncf %90 : vector<8x8xf32> to vector<8x8xbf16>
    %92 = vector.extract_strided_slice %4 {offsets = [0, 0], sizes = [8, 32], strides = [1, 1]} : vector<16x32xf32> to vector<8x32xf32>
    %93 = arith.truncf %92 : vector<8x32xf32> to vector<8x32xbf16>
    %cst_46 = arith.constant dense<0.000000e+00> : vector<8x32xf32>
    %94 = tpu.matmul %91, %93, %cst_46 {dimension_numbers = #tpu.dot_dimension_numbers<[1], [0], [0], [1], [0, 0, 1, 1], [], []>} : vector<8x8xbf16>, vector<8x32xbf16>, vector<8x32xf32> -> vector<8x32xf32>
    %95 = vector.extract_strided_slice %31 {offsets = [8, 0], sizes = [8, 32], strides = [1, 1]} : vector<16x32xf32> to vector<8x32xf32>
    %96 = vector.extract_strided_slice %34 {offsets = [8, 0], sizes = [8, 32], strides = [1, 1]} : vector<16x32xf32> to vector<8x32xf32>
    %97 = arith.truncf %95 : vector<8x32xf32> to vector<8x32xbf16>
    %98 = arith.truncf %96 : vector<8x32xf32> to vector<8x32xbf16>
    "tpu.trace_start"() <{level = 10 : i32, message = "nd,md->nm"}> : () -> ()
    %cst_47 = arith.constant dense<0.000000e+00> : vector<8x8xf32>
    %99 = tpu.matmul %97, %98, %cst_47 {dimension_numbers = #tpu.dot_dimension_numbers<[1], [1], [0], [0], [0, 0, 1, 0], [], []>} : vector<8x32xbf16>, vector<8x32xbf16>, vector<8x8xf32> -> vector<8x8xf32>
    "tpu.trace_stop"() : () -> ()
    %100 = arith.mulf %95, %95 : vector<8x32xf32>
    %cst_48 = arith.constant dense<0.000000e+00> : vector<8xf32>
    %101 = vector.multi_reduction <add>, %100, %cst_48 [1] : vector<8x32xf32> to vector<8xf32>
    %102 = vector.shape_cast %101 : vector<8xf32> to vector<8x1xf32>
    %103 = math.sqrt %102 : vector<8x1xf32>
    %104 = arith.mulf %96, %96 : vector<8x32xf32>
    %cst_49 = arith.constant dense<0.000000e+00> : vector<8xf32>
    %105 = vector.multi_reduction <add>, %104, %cst_49 [1] : vector<8x32xf32> to vector<8xf32>
    %106 = vector.shape_cast %105 : vector<8xf32> to vector<8x1xf32>
    %107 = math.sqrt %106 : vector<8x1xf32>
    %108 = tpu.transpose %107, [1, 0] : vector<8x1xf32> -> vector<1x8xf32>
    %109 = vector.broadcast %103 : vector<8x1xf32> to vector<8x8xf32>
    %110 = vector.broadcast %108 : vector<1x8xf32> to vector<8x8xf32>
    %111 = arith.mulf %109, %110 : vector<8x8xf32>
    %cst_50 = arith.constant 9.99999993E-9 : f32
    %112 = vector.broadcast %cst_50 : f32 to vector<8x8xf32>
    %113 = arith.maximumf %111, %112 : vector<8x8xf32>
    %114 = tpu.reciprocal %113 {approx = true} : vector<8x8xf32> -> vector<8x8xf32>
    %115 = arith.mulf %99, %114 : vector<8x8xf32>
    %116 = vector.extract_strided_slice %36 {offsets = [1, 0, 0], sizes = [1, 1, 8], strides = [1, 1, 1]} : vector<2x1x8xf32> to vector<1x1x8xf32>
    %117 = vector.shape_cast %116 : vector<1x1x8xf32> to vector<1x8xf32>
    %118 = vector.broadcast %117 : vector<1x8xf32> to vector<8x8xf32>
    %119 = arith.addf %115, %118 : vector<8x8xf32>
    %cst_51 = arith.constant dense<0xFF800000> : vector<8xf32>
    %120 = vector.multi_reduction <maximumf>, %119, %cst_51 [1] : vector<8x8xf32> to vector<8xf32>
    %121 = vector.shape_cast %120 : vector<8xf32> to vector<8x1xf32>
    %122 = vector.broadcast %121 : vector<8x1xf32> to vector<8x8xf32>
    %123 = arith.subf %119, %122 : vector<8x8xf32>
    %124 = math.exp %123 : vector<8x8xf32>
    %cst_52 = arith.constant dense<0.000000e+00> : vector<8xf32>
    %125 = vector.multi_reduction <add>, %124, %cst_52 [1] : vector<8x8xf32> to vector<8xf32>
    %126 = vector.shape_cast %125 : vector<8xf32> to vector<8x1xf32>
    %127 = tpu.reciprocal %126 {approx = true} : vector<8x1xf32> -> vector<8x1xf32>
    %128 = vector.broadcast %127 : vector<8x1xf32> to vector<8x8xf32>
    %129 = arith.mulf %124, %128 : vector<8x8xf32>
    %130 = arith.truncf %129 : vector<8x8xf32> to vector<8x8xbf16>
    %131 = vector.extract_strided_slice %6 {offsets = [8, 0], sizes = [8, 32], strides = [1, 1]} : vector<16x32xf32> to vector<8x32xf32>
    %132 = arith.truncf %131 : vector<8x32xf32> to vector<8x32xbf16>
    %cst_53 = arith.constant dense<0.000000e+00> : vector<8x32xf32>
    %133 = tpu.matmul %130, %132, %cst_53 {dimension_numbers = #tpu.dot_dimension_numbers<[1], [0], [0], [1], [0, 0, 1, 1], [], []>} : vector<8x8xbf16>, vector<8x32xbf16>, vector<8x32xf32> -> vector<8x32xf32>
    %134 = tpu.transpose %115, [1, 0] : vector<8x8xf32> -> vector<8x8xf32>
    %135 = vector.extract_strided_slice %35 {offsets = [1, 0, 0], sizes = [1, 1, 8], strides = [1, 1, 1]} : vector<2x1x8xf32> to vector<1x1x8xf32>
    %136 = vector.shape_cast %135 : vector<1x1x8xf32> to vector<1x8xf32>
    %137 = vector.broadcast %136 : vector<1x8xf32> to vector<8x8xf32>
    %138 = arith.addf %134, %137 : vector<8x8xf32>
    %cst_54 = arith.constant dense<0xFF800000> : vector<8xf32>
    %139 = vector.multi_reduction <maximumf>, %138, %cst_54 [1] : vector<8x8xf32> to vector<8xf32>
    %140 = vector.shape_cast %139 : vector<8xf32> to vector<8x1xf32>
    %141 = vector.broadcast %140 : vector<8x1xf32> to vector<8x8xf32>
    %142 = arith.subf %138, %141 : vector<8x8xf32>
    %143 = math.exp %142 : vector<8x8xf32>
    %cst_55 = arith.constant dense<0.000000e+00> : vector<8xf32>
    %144 = vector.multi_reduction <add>, %143, %cst_55 [1] : vector<8x8xf32> to vector<8xf32>
    %145 = vector.shape_cast %144 : vector<8xf32> to vector<8x1xf32>
    %146 = tpu.reciprocal %145 {approx = true} : vector<8x1xf32> -> vector<8x1xf32>
    %147 = vector.broadcast %146 : vector<8x1xf32> to vector<8x8xf32>
    %148 = arith.mulf %143, %147 : vector<8x8xf32>
    %149 = arith.truncf %148 : vector<8x8xf32> to vector<8x8xbf16>
    %150 = vector.extract_strided_slice %4 {offsets = [8, 0], sizes = [8, 32], strides = [1, 1]} : vector<16x32xf32> to vector<8x32xf32>
    %151 = arith.truncf %150 : vector<8x32xf32> to vector<8x32xbf16>
    %cst_56 = arith.constant dense<0.000000e+00> : vector<8x32xf32>
    %152 = tpu.matmul %149, %151, %cst_56 {dimension_numbers = #tpu.dot_dimension_numbers<[1], [0], [0], [1], [0, 0, 1, 1], [], []>} : vector<8x8xbf16>, vector<8x32xbf16>, vector<8x32xf32> -> vector<8x32xf32>
    %153 = tpu.concatenate %75, %133 in 0 : vector<8x32xf32>, vector<8x32xf32> -> vector<16x32xf32>
    %154 = tpu.concatenate %94, %152 in 0 : vector<8x32xf32>, vector<8x32xf32> -> vector<16x32xf32>
    %155 = arith.mulf %153, %4 : vector<16x32xf32>
    %156 = arith.negf %155 : vector<16x32xf32>
    %157 = math.exp %156 : vector<16x32xf32>
    %cst_57 = arith.constant 1.000000e+00 : f32
    %158 = vector.broadcast %cst_57 : f32 to vector<16x32xf32>
    %159 = arith.addf %158, %157 : vector<16x32xf32>
    %160 = arith.divf %158, %159 : vector<16x32xf32>
    %161 = arith.mulf %160, %153 : vector<16x32xf32>
    %162 = arith.mulf %154, %6 : vector<16x32xf32>
    %163 = arith.negf %162 : vector<16x32xf32>
    %164 = math.exp %163 : vector<16x32xf32>
    %cst_58 = arith.constant 1.000000e+00 : f32
    %165 = vector.broadcast %cst_58 : f32 to vector<16x32xf32>
    %166 = arith.addf %165, %164 : vector<16x32xf32>
    %167 = arith.divf %165, %166 : vector<16x32xf32>
    %168 = arith.mulf %167, %154 : vector<16x32xf32>
    %169 = arith.truncf %161 : vector<16x32xf32> to vector<16x32xbf16>
    %cst_59 = arith.constant dense<0.000000e+00> : vector<16x32xf32>
    %170 = tpu.matmul %169, %17, %cst_59 {dimension_numbers = #tpu.dot_dimension_numbers<[1], [0], [0], [1], [0, 0, 1, 1], [], []>} : vector<16x32xbf16>, vector<32x32xbf16>, vector<16x32xf32> -> vector<16x32xf32>
    %171 = vector.broadcast %26 : vector<1x32xf32> to vector<16x32xf32>
    %172 = arith.addf %170, %171 : vector<16x32xf32>
    %173 = arith.truncf %168 : vector<16x32xf32> to vector<16x32xbf16>
    %cst_60 = arith.constant dense<0.000000e+00> : vector<16x32xf32>
    %174 = tpu.matmul %173, %20, %cst_60 {dimension_numbers = #tpu.dot_dimension_numbers<[1], [0], [0], [1], [0, 0, 1, 1], [], []>} : vector<16x32xbf16>, vector<32x32xbf16>, vector<16x32xf32> -> vector<16x32xf32>
    %175 = vector.broadcast %28 : vector<1x32xf32> to vector<16x32xf32>
    %176 = arith.addf %174, %175 : vector<16x32xf32>
    %177 = arith.addf %172, %4 : vector<16x32xf32>
    %178 = vector.shape_cast %177 : vector<16x32xf32> to vector<2x8x32xf32>
    %c0_61 = arith.constant 0 : index
    %c0_62 = arith.constant 0 : index
    %c0_63 = arith.constant 0 : index
    %179 = vector.load %arg14[%c0_61, %c0_62, %c0_63] : memref<2x8x32xf32, #tpu.memory_space<vmem>>, vector<2x8x32xf32>
    tpu.vector_store %arg14[%c0_61, %c0_62, %c0_63], %178 {strides = array<i32>} : memref<2x8x32xf32, #tpu.memory_space<vmem>>, vector<2x8x32xf32>,
    %180 = arith.addf %176, %6 : vector<16x32xf32>
    %181 = vector.shape_cast %180 : vector<16x32xf32> to vector<2x8x32xf32>
    %c0_64 = arith.constant 0 : index
    %c0_65 = arith.constant 0 : index
    %c0_66 = arith.constant 0 : index
    %182 = vector.load %arg15[%c0_64, %c0_65, %c0_66] : memref<2x8x32xf32, #tpu.memory_space<vmem>>, vector<2x8x32xf32>
    tpu.vector_store %arg15[%c0_64, %c0_65, %c0_66], %181 {strides = array<i32>} : memref<2x8x32xf32, #tpu.memory_space<vmem>>, vector<2x8x32xf32>,
    return
  }
  func.func @transform_0(%arg0: i32, %arg1: i32) -> (i32, i32, i32) {
    %c0_i32 = arith.constant 0 : i32
    %c0_i32_0 = arith.constant 0 : i32
    %c0_i32_1 = arith.constant 0 : i32
    return %arg0, %c0_i32, %c0_i32_0 : i32, i32, i32
  }
  func.func @transform_1(%arg0: i32, %arg1: i32) -> (i32, i32, i32) {
    %c0_i32 = arith.constant 0 : i32
    %c0_i32_0 = arith.constant 0 : i32
    %c0_i32_1 = arith.constant 0 : i32
    return %arg0, %c0_i32, %c0_i32_0 : i32, i32, i32
  }
  func.func @transform_2(%arg0: i32, %arg1: i32) -> (i32, i32, i32) {
    %c0_i32 = arith.constant 0 : i32
    %c0_i32_0 = arith.constant 0 : i32
    %c0_i32_1 = arith.constant 0 : i32
    return %arg0, %c0_i32, %c0_i32_0 : i32, i32, i32
  }
  func.func @transform_3(%arg0: i32, %arg1: i32) -> (i32, i32, i32) {
    %c0_i32 = arith.constant 0 : i32
    %c0_i32_0 = arith.constant 0 : i32
    %c0_i32_1 = arith.constant 0 : i32
    return %arg0, %c0_i32, %c0_i32_0 : i32, i32, i32
  }
  func.func @transform_4(%arg0: i32, %arg1: i32) -> (i32, i32, i32) {
    %c0_i32 = arith.constant 0 : i32
    %c0_i32_0 = arith.constant 0 : i32
    %c0_i32_1 = arith.constant 0 : i32
    return %arg1, %c0_i32, %c0_i32_0 : i32, i32, i32
  }
  func.func @transform_5(%arg0: i32, %arg1: i32) -> (i32, i32, i32) {
    %c0_i32 = arith.constant 0 : i32
    %c0_i32_0 = arith.constant 0 : i32
    %c0_i32_1 = arith.constant 0 : i32
    return %arg1, %c0_i32, %c0_i32_0 : i32, i32, i32
  }
  func.func @transform_6(%arg0: i32, %arg1: i32) -> (i32, i32, i32) {
    %c0_i32 = arith.constant 0 : i32
    %c0_i32_0 = arith.constant 0 : i32
    %c0_i32_1 = arith.constant 0 : i32
    return %arg1, %c0_i32, %c0_i32_0 : i32, i32, i32
  }
  func.func @transform_7(%arg0: i32, %arg1: i32) -> (i32, i32, i32) {
    %c0_i32 = arith.constant 0 : i32
    %c0_i32_0 = arith.constant 0 : i32
    %c0_i32_1 = arith.constant 0 : i32
    return %arg1, %c0_i32, %c0_i32_0 : i32, i32, i32
  }
  func.func @transform_8(%arg0: i32, %arg1: i32) -> (i32, i32, i32) {
    %c0_i32 = arith.constant 0 : i32
    %c0_i32_0 = arith.constant 0 : i32
    %c0_i32_1 = arith.constant 0 : i32
    return %arg1, %c0_i32, %c0_i32_0 : i32, i32, i32
  }
  func.func @transform_9(%arg0: i32, %arg1: i32) -> (i32, i32, i32) {
    %c0_i32 = arith.constant 0 : i32
    %c0_i32_0 = arith.constant 0 : i32
    %c0_i32_1 = arith.constant 0 : i32
    return %arg1, %c0_i32, %c0_i32_0 : i32, i32, i32
  }
  func.func @transform_10(%arg0: i32, %arg1: i32) -> (i32, i32, i32) {
    %c0_i32 = arith.constant 0 : i32
    %c0_i32_0 = arith.constant 0 : i32
    %c0_i32_1 = arith.constant 0 : i32
    return %arg1, %c0_i32, %c0_i32_0 : i32, i32, i32
  }
  func.func @transform_11(%arg0: i32, %arg1: i32) -> (i32, i32, i32) {
    %c0_i32 = arith.constant 0 : i32
    %c0_i32_0 = arith.constant 0 : i32
    %c0_i32_1 = arith.constant 0 : i32
    return %arg1, %c0_i32, %c0_i32_0 : i32, i32, i32
  }
  func.func @transform_12(%arg0: i32, %arg1: i32) -> (i32, i32, i32) {
    %c0_i32 = arith.constant 0 : i32
    %c0_i32_0 = arith.constant 0 : i32
    %c0_i32_1 = arith.constant 0 : i32
    return %arg0, %c0_i32, %c0_i32_0 : i32, i32, i32
  }
  func.func @transform_13(%arg0: i32, %arg1: i32) -> (i32, i32, i32) {
    %c0_i32 = arith.constant 0 : i32
    %c0_i32_0 = arith.constant 0 : i32
    %c0_i32_1 = arith.constant 0 : i32
    return %arg0, %c0_i32, %c0_i32_0 : i32, i32, i32
  }
}

</mosaic_0001>

<llo_original>
// kernel: tpu_custom_call.1
$region0: #{tpu_custom_call.1}
  #allocation0 [shape = 'u32[]', space=smem, size = 0x4, offset = 0x4, fixed_abs, tag = 'smem constant byte address 0x4 - core index']
  #allocation1 [shape = 'u32[144,128]{1,0:T(1,128)}', space=vmem, size = 0x12000, scoped, tag = 'internal scratch']
  %s0 = inlined_call_operand.hbm [shape: f32[2,8,32], index: 0, kind: input, shape index: {}]
  %s1 = inlined_call_operand.hbm [shape: f32[2,8,32], index: 1, kind: input, shape index: {}]
  %s2 = inlined_call_operand.vmem [shape: f32[2,1,8], index: 2, kind: input, shape index: {}]
  %s3 = inlined_call_operand.vmem [shape: f32[2,1,8], index: 3, kind: input, shape index: {}]
  %s4 = inlined_call_operand.hbm [shape: f32[2,32,32], index: 4, kind: input, shape index: {}]
  %s5 = inlined_call_operand.vmem [shape: f32[2,1,32], index: 5, kind: input, shape index: {}]
  %s6 = inlined_call_operand.hbm [shape: f32[2,32,32], index: 6, kind: input, shape index: {}]
  %s7 = inlined_call_operand.vmem [shape: f32[2,1,32], index: 7, kind: input, shape index: {}]
  %s8 = inlined_call_operand.hbm [shape: f32[2,32,32], index: 8, kind: input, shape index: {}]
  %s9 = inlined_call_operand.vmem [shape: f32[2,1,32], index: 9, kind: input, shape index: {}]
  %s10 = inlined_call_operand.hbm [shape: f32[2,32,32], index: 10, kind: input, shape index: {}]
  %s11 = inlined_call_operand.vmem [shape: f32[2,1,32], index: 11, kind: input, shape index: {}]
  %s12 = inlined_call_operand.hbm [shape: f32[2,8,32], index: 12, kind: output, shape index: {0}]
  %s13 = inlined_call_operand.hbm [shape: f32[2,8,32], index: 13, kind: output, shape index: {1}]
  %14 = xla_tuple %s12, %s13
  %s15 = sld [smem:[#allocation0]]
  $region117: #{tpu_custom_call.1} parent=0
    _
  %s17 = ssub.s32 1, %s15
  %s18 = scalar_select 0, %s17, %s15
  $region1: #{tpu_custom_call.1} parent=0
    #allocation2 [shape = 'u8[8192]{0}', space=vmem, size = 0x2000, scoped, tag = 'input window, operand 0, single buffered']
    #allocation3 [shape = 's32[2]{0}', space=sflag, size = 0x8, scoped, tag = 'scoped memory for tpu_custom_call.1']
    #allocation4 [shape = 's32[2]{0}', space=sflag, size = 0x8, scoped, tag = 'scoped memory for tpu_custom_call.1']
    #allocation5 [shape = 'u8[8192]{0}', space=vmem, size = 0x2000, scoped, tag = 'input window, operand 1, single buffered']
    #allocation6 [shape = 's32[1]{0}', space=sflag, size = 0x4, scoped, tag = 'scoped memory for tpu_custom_call.1']
    #allocation7 [shape = 'u8[32768]{0}', space=vmem, size = 0x8000, scoped, tag = 'input window, operand 4']
    #allocation8 [shape = 'u8[32768]{0}', space=vmem, size = 0x8000, scoped, tag = 'input window, operand 6']
    #allocation9 [shape = 'u8[32768]{0}', space=vmem, size = 0x8000, scoped, tag = 'input window, operand 8']
    #allocation10 [shape = 'u8[32768]{0}', space=vmem, size = 0x8000, scoped, tag = 'input window, operand 10']
    #allocation11 [shape = 'u8[8192]{0}', space=vmem, size = 0x2000, scoped, tag = 'output window, operand 0, single buffered']
    #allocation12 [shape = 'u8[8192]{0}', space=vmem, size = 0x2000, scoped, tag = 'output window, operand 1, single buffered']
    #allocation13 [shape = 's32[1]{0}', space=sflag, size = 0x4, scoped, tag = 'scoped memory for tpu_custom_call.1']
    %19 = vsyncpa [#allocation3], 0
    %20 = vsyncpa [#allocation6], 0
    %21 = vsyncpa [#allocation4], 0
    %22 = vsyncpa [#allocation13], 0
    loop: start=0, step=1, limit=4
    $region2: #{tpu_custom_call.1} parent=1 // loop_pre_header
      _
    $region3: #{tpu_custom_call.1} parent=1 // loop_header
      %s24 = sphi 0, %s28
      %p25 = scmp.ge.s32.totalorder %s24, 4
      %s31 = sphi 0, %s43
      %s32 = sphi 0, %s39
      %s33 = sphi 0, %s31
      %s34 = sphi 0, %s32
      %s35 = sphi 0, %s33
      %s36 = sphi 0, %s34
      %s46 = sphi 0, %s48
      %s49 = sphi 0, %s46
      %s50 = sphi 0, %s49
      %s66 = sphi 0, %s50
      %s72 = sphi 0, %s74
      %s75 = sphi 0, %s72
      %s76 = sphi 0, %s75
      %s92 = sphi 0, %s76
      %s98 = sphi 0, %s100
      %s101 = sphi 0, %s98
      %s102 = sphi 0, %s101
      %s118 = sphi 0, %s102
      %s124 = sphi 0, %s126
      %s127 = sphi 0, %s124
      %s128 = sphi 0, %s127
      %s144 = sphi 0, %s128
      %s150 = sphi 0, %s152
      %s153 = sphi 0, %s150
      %s154 = sphi 0, %s153
      %s170 = sphi 0, %s154
      %s176 = sphi 0, %s178
      %s179 = sphi 0, %s176
      %s180 = sphi 0, %s179
      %s196 = sphi 0, %s180
      %s202 = sphi 0, %s204
      %s205 = sphi 0, %s202
      %s206 = sphi 0, %s205
      %s222 = sphi 0, %s206
      %s228 = sphi 0, %s230
      %s231 = sphi 0, %s228
      %s232 = sphi 0, %s231
      %s248 = sphi 0, %s232
      %s254 = sphi 0, %s256
      %s257 = sphi 0, %s254
      %s258 = sphi 0, %s257
      %s274 = sphi 0, %s258
      %s280 = sphi 0, %s282
      %s283 = sphi 0, %s280
      %s284 = sphi 0, %s283
      %s300 = sphi 0, %s284
      %s306 = sphi 0, %s308
      %s309 = sphi 0, %s306
      %s310 = sphi 0, %s309
      %s326 = sphi 0, %s310
      %s332 = sphi 0, %s334
      %s335 = sphi 0, %s332
      %s336 = sphi 0, %s335
      %s352 = sphi 0, %s336
      %s358 = sphi 0, %s360
      %s361 = sphi 0, %s358
      %s362 = sphi 0, %s361
      %s378 = sphi 0, %s362
      %s384 = sphi 0, %s386
      %s387 = sphi 0, %s384
      %s388 = sphi 0, %s387
      %s404 = sphi 0, %s388
    $region4: #{tpu_custom_call.1} parent=1 // loop_header_branch
      %27 = sbr.rel (%p25) target = $region8
    $region5: #{tpu_custom_call.1} parent=1 // loop_body
      %s29 = ssub.s32 %s24, 1
      %s30 = ssub.s32 %s24, 2
      %s37 = sadd.s32 1, %s32
      %p38 = scmp.ge.s32.totalorder %s37, 2
      %s39 = scalar_select %p38, 0, %s37
      %s40 = sadd.s32 1, %s31
      %s41 = scalar_select %p38, %s40, %s31
      %p42 = scmp.ge.s32.totalorder %s41, 1
      %s43 = scalar_select %p42, 0, %s41
      %s44 = ssub.s32 %s31, %s43
      %p45 = scmp.eq.s32.totalorder %s44, 0
      %s47 = sadd.s32 %s46, 1
      %s48 = scalar_select %p45, %s46, %s47
      %p51 = pneg %p45
      %p52 = scmp.eq.s32.totalorder %s24, 1
      %p53 = por %p51, %p52
      %p54 = scmp.ne.s32.totalorder %s46, %s49
      %p55 = scmp.eq.s32.totalorder %s24, 0
      %p56 = por %p54, %p55
      %p57 = scmp.ne.s32.totalorder %s46, %s49
      %p58 = scmp.eq.s32.totalorder %s29, 1
      %p59 = por %p57, %p58
      %p60 = scmp.ne.s32.totalorder %s49, %s50
      %p61 = scmp.eq.s32.totalorder %s29, 0
      %p62 = por %p60, %p61
      %p63 = scmp.ne.s32.totalorder %s49, %s50
      %p64 = scmp.eq.s32.totalorder %s30, 1
      %p65 = por %p63, %p64
      %p67 = scmp.ne.s32.totalorder %s50, %s66
      %p68 = scmp.eq.s32.totalorder %s30, 0
      %p69 = por %p67, %p68
      %s70 = ssub.s32 %s31, %s43
      %p71 = scmp.eq.s32.totalorder %s70, 0
      %s73 = sadd.s32 %s72, 1
      %s74 = scalar_select %p71, %s72, %s73
      %p77 = pneg %p71
      %p78 = scmp.eq.s32.totalorder %s24, 1
      %p79 = por %p77, %p78
      %p80 = scmp.ne.s32.totalorder %s72, %s75
      %p81 = scmp.eq.s32.totalorder %s24, 0
      %p82 = por %p80, %p81
      %p83 = scmp.ne.s32.totalorder %s72, %s75
      %p84 = scmp.eq.s32.totalorder %s29, 1
      %p85 = por %p83, %p84
      %p86 = scmp.ne.s32.totalorder %s75, %s76
      %p87 = scmp.eq.s32.totalorder %s29, 0
      %p88 = por %p86, %p87
      %p89 = scmp.ne.s32.totalorder %s75, %s76
      %p90 = scmp.eq.s32.totalorder %s30, 1
      %p91 = por %p89, %p90
      %p93 = scmp.ne.s32.totalorder %s76, %s92
      %p94 = scmp.eq.s32.totalorder %s30, 0
      %p95 = por %p93, %p94
      %s96 = ssub.s32 %s31, %s43
      %p97 = scmp.eq.s32.totalorder %s96, 0
      %s99 = sadd.s32 %s98, 1
      %s100 = scalar_select %p97, %s98, %s99
      %p103 = pneg %p97
      %p104 = scmp.eq.s32.totalorder %s24, 1
      %p105 = por %p103, %p104
      %p106 = scmp.ne.s32.totalorder %s98, %s101
      %p107 = scmp.eq.s32.totalorder %s24, 0
      %p108 = por %p106, %p107
      %p109 = scmp.ne.s32.totalorder %s98, %s101
      %p110 = scmp.eq.s32.totalorder %s29, 1
      %p111 = por %p109, %p110
      %p112 = scmp.ne.s32.totalorder %s101, %s102
      %p113 = scmp.eq.s32.totalorder %s29, 0
      %p114 = por %p112, %p113
      %p115 = scmp.ne.s32.totalorder %s101, %s102
      %p116 = scmp.eq.s32.totalorder %s30, 1
      %p117 = por %p115, %p116
      %p119 = scmp.ne.s32.totalorder %s102, %s118
      %p120 = scmp.eq.s32.totalorder %s30, 0
      %p121 = por %p119, %p120
      %s122 = ssub.s32 %s31, %s43
      %p123 = scmp.eq.s32.totalorder %s122, 0
      %s125 = sadd.s32 %s124, 1
      %s126 = scalar_select %p123, %s124, %s125
      %p129 = pneg %p123
      %p130 = scmp.eq.s32.totalorder %s24, 1
      %p131 = por %p129, %p130
      %p132 = scmp.ne.s32.totalorder %s124, %s127
      %p133 = scmp.eq.s32.totalorder %s24, 0
      %p134 = por %p132, %p133
      %p135 = scmp.ne.s32.totalorder %s124, %s127
      %p136 = scmp.eq.s32.totalorder %s29, 1
      %p137 = por %p135, %p136
      %p138 = scmp.ne.s32.totalorder %s127, %s128
      %p139 = scmp.eq.s32.totalorder %s29, 0
      %p140 = por %p138, %p139
      %p141 = scmp.ne.s32.totalorder %s127, %s128
      %p142 = scmp.eq.s32.totalorder %s30, 1
      %p143 = por %p141, %p142
      %p145 = scmp.ne.s32.totalorder %s128, %s144
      %p146 = scmp.eq.s32.totalorder %s30, 0
      %p147 = por %p145, %p146
      %s148 = ssub.s32 %s32, %s39
      %p149 = scmp.eq.s32.totalorder %s148, 0
      %s151 = sadd.s32 %s150, 1
      %s152 = scalar_select %p149, %s150, %s151
      %p155 = pneg %p149
      %p156 = scmp.eq.s32.totalorder %s24, 1
      %p157 = por %p155, %p156
      %p158 = scmp.ne.s32.totalorder %s150, %s153
      %p159 = scmp.eq.s32.totalorder %s24, 0
      %p160 = por %p158, %p159
      %p161 = scmp.ne.s32.totalorder %s150, %s153
      %p162 = scmp.eq.s32.totalorder %s29, 1
      %p163 = por %p161, %p162
      %p164 = scmp.ne.s32.totalorder %s153, %s154
      %p165 = scmp.eq.s32.totalorder %s29, 0
      %p166 = por %p164, %p165
      %p167 = scmp.ne.s32.totalorder %s153, %s154
      %p168 = scmp.eq.s32.totalorder %s30, 1
      %p169 = por %p167, %p168
      %p171 = scmp.ne.s32.totalorder %s154, %s170
      %p172 = scmp.eq.s32.totalorder %s30, 0
      %p173 = por %p171, %p172
      %s174 = ssub.s32 %s32, %s39
      %p175 = scmp.eq.s32.totalorder %s174, 0
      %s177 = sadd.s32 %s176, 1
      %s178 = scalar_select %p175, %s176, %s177
      %p181 = pneg %p175
      %p182 = scmp.eq.s32.totalorder %s24, 1
      %p183 = por %p181, %p182
      %p184 = scmp.ne.s32.totalorder %s176, %s179
      %p185 = scmp.eq.s32.totalorder %s24, 0
      %p186 = por %p184, %p185
      %p187 = scmp.ne.s32.totalorder %s176, %s179
      %p188 = scmp.eq.s32.totalorder %s29, 1
      %p189 = por %p187, %p188
      %p190 = scmp.ne.s32.totalorder %s179, %s180
      %p191 = scmp.eq.s32.totalorder %s29, 0
      %p192 = por %p190, %p191
      %p193 = scmp.ne.s32.totalorder %s179, %s180
      %p194 = scmp.eq.s32.totalorder %s30, 1
      %p195 = por %p193, %p194
      %p197 = scmp.ne.s32.totalorder %s180, %s196
      %p198 = scmp.eq.s32.totalorder %s30, 0
      %p199 = por %p197, %p198
      %s200 = ssub.s32 %s32, %s39
      %p201 = scmp.eq.s32.totalorder %s200, 0
      %s203 = sadd.s32 %s202, 1
      %s204 = scalar_select %p201, %s202, %s203
      %p207 = pneg %p201
      %p208 = scmp.eq.s32.totalorder %s24, 1
      %p209 = por %p207, %p208
      %p210 = scmp.ne.s32.totalorder %s202, %s205
      %p211 = scmp.eq.s32.totalorder %s24, 0
      %p212 = por %p210, %p211
      %p213 = scmp.ne.s32.totalorder %s202, %s205
      %p214 = scmp.eq.s32.totalorder %s29, 1
      %p215 = por %p213, %p214
      %p216 = scmp.ne.s32.totalorder %s205, %s206
      %p217 = scmp.eq.s32.totalorder %s29, 0
      %p218 = por %p216, %p217
      %p219 = scmp.ne.s32.totalorder %s205, %s206
      %p220 = scmp.eq.s32.totalorder %s30, 1
      %p221 = por %p219, %p220
      %p223 = scmp.ne.s32.totalorder %s206, %s222
      %p224 = scmp.eq.s32.totalorder %s30, 0
      %p225 = por %p223, %p224
      %s226 = ssub.s32 %s32, %s39
      %p227 = scmp.eq.s32.totalorder %s226, 0
      %s229 = sadd.s32 %s228, 1
      %s230 = scalar_select %p227, %s228, %s229
      %p233 = pneg %p227
      %p234 = scmp.eq.s32.totalorder %s24, 1
      %p235 = por %p233, %p234
      %p236 = scmp.ne.s32.totalorder %s228, %s231
      %p237 = scmp.eq.s32.totalorder %s24, 0
      %p238 = por %p236, %p237
      %p239 = scmp.ne.s32.totalorder %s228, %s231
      %p240 = scmp.eq.s32.totalorder %s29, 1
      %p241 = por %p239, %p240
      %p242 = scmp.ne.s32.totalorder %s231, %s232
      %p243 = scmp.eq.s32.totalorder %s29, 0
      %p244 = por %p242, %p243
      %p245 = scmp.ne.s32.totalorder %s231, %s232
      %p246 = scmp.eq.s32.totalorder %s30, 1
      %p247 = por %p245, %p246
      %p249 = scmp.ne.s32.totalorder %s232, %s248
      %p250 = scmp.eq.s32.totalorder %s30, 0
      %p251 = por %p249, %p250
      %s252 = ssub.s32 %s32, %s39
      %p253 = scmp.eq.s32.totalorder %s252, 0
      %s255 = sadd.s32 %s254, 1
      %s256 = scalar_select %p253, %s254, %s255
      %p259 = pneg %p253
      %p260 = scmp.eq.s32.totalorder %s24, 1
      %p261 = por %p259, %p260
      %p262 = scmp.ne.s32.totalorder %s254, %s257
      %p263 = scmp.eq.s32.totalorder %s24, 0
      %p264 = por %p262, %p263
      %p265 = scmp.ne.s32.totalorder %s254, %s257
      %p266 = scmp.eq.s32.totalorder %s29, 1
      %p267 = por %p265, %p266
      %p268 = scmp.ne.s32.totalorder %s257, %s258
      %p269 = scmp.eq.s32.totalorder %s29, 0
      %p270 = por %p268, %p269
      %p271 = scmp.ne.s32.totalorder %s257, %s258
      %p272 = scmp.eq.s32.totalorder %s30, 1
      %p273 = por %p271, %p272
      %p275 = scmp.ne.s32.totalorder %s258, %s274
      %p276 = scmp.eq.s32.totalorder %s30, 0
      %p277 = por %p275, %p276
      %s278 = ssub.s32 %s32, %s39
      %p279 = scmp.eq.s32.totalorder %s278, 0
      %s281 = sadd.s32 %s280, 1
      %s282 = scalar_select %p279, %s280, %s281
      %p285 = pneg %p279
      %p286 = scmp.eq.s32.totalorder %s24, 1
      %p287 = por %p285, %p286
      %p288 = scmp.ne.s32.totalorder %s280, %s283
      %p289 = scmp.eq.s32.totalorder %s24, 0
      %p290 = por %p288, %p289
      %p291 = scmp.ne.s32.totalorder %s280, %s283
      %p292 = scmp.eq.s32.totalorder %s29, 1
      %p293 = por %p291, %p292
      %p294 = scmp.ne.s32.totalorder %s283, %s284
      %p295 = scmp.eq.s32.totalorder %s29, 0
      %p296 = por %p294, %p295
      %p297 = scmp.ne.s32.totalorder %s283, %s284
      %p298 = scmp.eq.s32.totalorder %s30, 1
      %p299 = por %p297, %p298
      %p301 = scmp.ne.s32.totalorder %s284, %s300
      %p302 = scmp.eq.s32.totalorder %s30, 0
      %p303 = por %p301, %p302
      %s304 = ssub.s32 %s32, %s39
      %p305 = scmp.eq.s32.totalorder %s304, 0
      %s307 = sadd.s32 %s306, 1
      %s308 = scalar_select %p305, %s306, %s307
      %p311 = pneg %p305
      %p312 = scmp.eq.s32.totalorder %s24, 1
      %p313 = por %p311, %p312
      %p314 = scmp.ne.s32.totalorder %s306, %s309
      %p315 = scmp.eq.s32.totalorder %s24, 0
      %p316 = por %p314, %p315
      %p317 = scmp.ne.s32.totalorder %s306, %s309
      %p318 = scmp.eq.s32.totalorder %s29, 1
      %p319 = por %p317, %p318
      %p320 = scmp.ne.s32.totalorder %s309, %s310
      %p321 = scmp.eq.s32.totalorder %s29, 0
      %p322 = por %p320, %p321
      %p323 = scmp.ne.s32.totalorder %s309, %s310
      %p324 = scmp.eq.s32.totalorder %s30, 1
      %p325 = por %p323, %p324
      %p327 = scmp.ne.s32.totalorder %s310, %s326
      %p328 = scmp.eq.s32.totalorder %s30, 0
      %p329 = por %p327, %p328
      %s330 = ssub.s32 %s32, %s39
      %p331 = scmp.eq.s32.totalorder %s330, 0
      %s333 = sadd.s32 %s332, 1
      %s334 = scalar_select %p331, %s332, %s333
      %p337 = pneg %p331
      %p338 = scmp.eq.s32.totalorder %s24, 1
      %p339 = por %p337, %p338
      %p340 = scmp.ne.s32.totalorder %s332, %s335
      %p341 = scmp.eq.s32.totalorder %s24, 0
      %p342 = por %p340, %p341
      %p343 = scmp.ne.s32.totalorder %s332, %s335
      %p344 = scmp.eq.s32.totalorder %s29, 1
      %p345 = por %p343, %p344
      %p346 = scmp.ne.s32.totalorder %s335, %s336
      %p347 = scmp.eq.s32.totalorder %s29, 0
      %p348 = por %p346, %p347
      %p349 = scmp.ne.s32.totalorder %s335, %s336
      %p350 = scmp.eq.s32.totalorder %s30, 1
      %p351 = por %p349, %p350
      %p353 = scmp.ne.s32.totalorder %s336, %s352
      %p354 = scmp.eq.s32.totalorder %s30, 0
      %p355 = por %p353, %p354
      %s356 = ssub.s32 %s31, %s43
      %p357 = scmp.eq.s32.totalorder %s356, 0
      %s359 = sadd.s32 %s358, 1
      %s360 = scalar_select %p357, %s358, %s359
      %p363 = pneg %p357
      %p364 = scmp.eq.s32.totalorder %s24, 1
      %p365 = por %p363, %p364
      %p366 = scmp.ne.s32.totalorder %s358, %s361
      %p367 = scmp.eq.s32.totalorder %s24, 0
      %p368 = por %p366, %p367
      %p369 = scmp.ne.s32.totalorder %s358, %s361
      %p370 = scmp.eq.s32.totalorder %s29, 1
      %p371 = por %p369, %p370
      %p372 = scmp.ne.s32.totalorder %s361, %s362
      %p373 = scmp.eq.s32.totalorder %s29, 0
      %p374 = por %p372, %p373
      %p375 = scmp.ne.s32.totalorder %s361, %s362
      %p376 = scmp.eq.s32.totalorder %s30, 1
      %p377 = por %p375, %p376
      %p379 = scmp.ne.s32.totalorder %s362, %s378
      %p380 = scmp.eq.s32.totalorder %s30, 0
      %p381 = por %p379, %p380
      %s382 = ssub.s32 %s31, %s43
      %p383 = scmp.eq.s32.totalorder %s382, 0
      %s385 = sadd.s32 %s384, 1
      %s386 = scalar_select %p383, %s384, %s385
      %p389 = pneg %p383
      %p390 = scmp.eq.s32.totalorder %s24, 1
      %p391 = por %p389, %p390
      %p392 = scmp.ne.s32.totalorder %s384, %s387
      %p393 = scmp.eq.s32.totalorder %s24, 0
      %p394 = por %p392, %p393
      %p395 = scmp.ne.s32.totalorder %s384, %s387
      %p396 = scmp.eq.s32.totalorder %s29, 1
      %p397 = por %p395, %p396
      %p398 = scmp.ne.s32.totalorder %s387, %s388
      %p399 = scmp.eq.s32.totalorder %s29, 0
      %p400 = por %p398, %p399
      %p401 = scmp.ne.s32.totalorder %s387, %s388
      %p402 = scmp.eq.s32.totalorder %s30, 1
      %p403 = por %p401, %p402
      %p405 = scmp.ne.s32.totalorder %s388, %s404
      %p406 = scmp.eq.s32.totalorder %s30, 0
      %p407 = por %p405, %p406
      %p408 = scmp.le.s32.totalorder 1, %s24
      %p409 = scmp.lt.s32.totalorder %s24, 3
      %p410 = pnand %p408, %p409
      %p411 = pneg %p410
      // Predicated region
      $region9: #{tpu_custom_call.1} parent=5 // pred_check
        _
      $region10: #{tpu_custom_call.1} parent=5 // pred_check_branch
        %413 = sbr.rel (%p410) target = $region12
      $region11: #{tpu_custom_call.1} parent=5 // pred_region
        %s414 = ssub.s32 %s24, 1
        // Predicated region
        $region13: #{tpu_custom_call.1} parent=11 // pred_check
          %p415 = pneg %p62
        $region14: #{tpu_custom_call.1} parent=11 // pred_check_branch
          %417 = sbr.rel (%p415) target = $region16
        $region15: #{tpu_custom_call.1} parent=11 // pred_region
          %s418 = smul.u32 2, %s33
          %s420 = ssub.s32 256, 256
          %421 = vsyncadd [#allocation3], %s420
          %s422 = smul.addr %s418, 128
          %s423 = scalar_lea.hbm %s0, %s422
          %s424 = sshll.u32 [#allocation2], 4
          %s425 = int_to_ptr.vmem [resolvable:$true] %s424
          %430 = dma.hbm_to_vmem [thread:$0]  %s423, 256, %s425, [#allocation3], 128, 128, 8
        $region16: #{tpu_custom_call.1} parent=11 // pred_fallthru
          _
        // Predicated region
        $region17: #{tpu_custom_call.1} parent=11 // pred_check
          %p431 = pneg %p88
        $region18: #{tpu_custom_call.1} parent=11 // pred_check_branch
          %433 = sbr.rel (%p431) target = $region20
        $region19: #{tpu_custom_call.1} parent=11 // pred_region
          %s434 = smul.u32 2, %s33
          %s436 = ssub.s32 256, 256
          %437 = vsyncadd [#allocation6], %s436
          %s438 = smul.addr %s434, 128
          %s439 = scalar_lea.hbm %s1, %s438
          %s440 = sshll.u32 [#allocation5], 4
          %s441 = int_to_ptr.vmem [resolvable:$true] %s440
          %446 = dma.hbm_to_vmem [thread:$0]  %s439, 256, %s441, [#allocation6], 128, 128, 8
        $region20: #{tpu_custom_call.1} parent=11 // pred_fallthru
          _
        // Predicated region
        $region21: #{tpu_custom_call.1} parent=11 // pred_check
          %p447 = pneg %p114
        $region22: #{tpu_custom_call.1} parent=11 // pred_check_branch
          %449 = sbr.rel (%p447) target = $region24
        $region23: #{tpu_custom_call.1} parent=11 // pred_region
          %s450 = smul.u32 2, %s33
          %p451 = scmp.lt.s32.totalorder %s450, 1
          %s452 = scalar_select %p451, %s450, 1
          %s453 = scalar_lea.vmem %s2, %s452
          %s454 = smul.u32 2, %s33
        $region24: #{tpu_custom_call.1} parent=11 // pred_fallthru
          _
        // Predicated region
        $region25: #{tpu_custom_call.1} parent=11 // pred_check
          %p455 = pneg %p140
        $region26: #{tpu_custom_call.1} parent=11 // pred_check_branch
          %457 = sbr.rel (%p455) target = $region28
        $region27: #{tpu_custom_call.1} parent=11 // pred_region
          %s458 = smul.u32 2, %s33
          %p459 = scmp.lt.s32.totalorder %s458, 1
          %s460 = scalar_select %p459, %s458, 1
          %s461 = scalar_lea.vmem %s3, %s460
          %s462 = smul.u32 2, %s33
        $region28: #{tpu_custom_call.1} parent=11 // pred_fallthru
          _
      $region12: #{tpu_custom_call.1} parent=5 // pred_fallthru
        _
      %p463 = scmp.lt.s32.totalorder %s24, 2
      // Predicated region
      $region29: #{tpu_custom_call.1} parent=5 // pred_check
        %p464 = pneg %p463
      $region30: #{tpu_custom_call.1} parent=5 // pred_check_branch
        %466 = sbr.rel (%p464) target = $region32
      $region31: #{tpu_custom_call.1} parent=5 // pred_region
        // Predicated region
        $region33: #{tpu_custom_call.1} parent=31 // pred_check
          %p467 = pneg %p160
        $region34: #{tpu_custom_call.1} parent=31 // pred_check_branch
          %469 = sbr.rel (%p467) target = $region36
        $region35: #{tpu_custom_call.1} parent=31 // pred_region
          %s470 = sand.u32 %s24, 1
          %s471 = scalar_lea.sflag [#allocation3], %s470
          %s472 = sand.u32 %s150, 1
          %s473 = smul.addr %s472, 32
          %s474 = scalar_lea.vmem [#allocation7], %s473
          %s476 = ssub.s32 512, 512
          %477 = vsyncadd %s471, %s476
          %s478 = smul.addr %s32, 4
          %s479 = smul.addr %s478, 128
          %s480 = scalar_lea.hbm %s4, %s479
          %s481 = sshll.u32 %s474, 4
          %s482 = int_to_ptr.vmem [resolvable:$true] %s481
          %487 = dma.hbm_to_vmem [thread:$0]  %s480, 512, %s482, %s471, 128, 128, 8
        $region36: #{tpu_custom_call.1} parent=31 // pred_fallthru
          _
        // Predicated region
        $region37: #{tpu_custom_call.1} parent=31 // pred_check
          %p488 = pneg %p186
        $region38: #{tpu_custom_call.1} parent=31 // pred_check_branch
          %490 = sbr.rel (%p488) target = $region40
        $region39: #{tpu_custom_call.1} parent=31 // pred_region
          %p491 = scmp.lt.s32.totalorder %s32, 1
          %s492 = scalar_select %p491, %s32, 1
          %s493 = scalar_lea.vmem %s5, %s492
        $region40: #{tpu_custom_call.1} parent=31 // pred_fallthru
          _
        // Predicated region
        $region41: #{tpu_custom_call.1} parent=31 // pred_check
          %p494 = pneg %p212
        $region42: #{tpu_custom_call.1} parent=31 // pred_check_branch
          %496 = sbr.rel (%p494) target = $region44
        $region43: #{tpu_custom_call.1} parent=31 // pred_region
          %s497 = sand.u32 %s24, 1
          %s498 = scalar_lea.sflag [#allocation3], %s497
          %s499 = sand.u32 %s202, 1
          %s500 = smul.addr %s499, 32
          %s501 = scalar_lea.vmem [#allocation8], %s500
          %s503 = ssub.s32 512, 512
          %504 = vsyncadd %s498, %s503
          %s505 = smul.addr %s32, 4
          %s506 = smul.addr %s505, 128
          %s507 = scalar_lea.hbm %s6, %s506
          %s508 = sshll.u32 %s501, 4
          %s509 = int_to_ptr.vmem [resolvable:$true] %s508
          %514 = dma.hbm_to_vmem [thread:$0]  %s507, 512, %s509, %s498, 128, 128, 8
        $region44: #{tpu_custom_call.1} parent=31 // pred_fallthru
          _
        // Predicated region
        $region45: #{tpu_custom_call.1} parent=31 // pred_check
          %p515 = pneg %p238
        $region46: #{tpu_custom_call.1} parent=31 // pred_check_branch
          %517 = sbr.rel (%p515) target = $region48
        $region47: #{tpu_custom_call.1} parent=31 // pred_region
          %p518 = scmp.lt.s32.totalorder %s32, 1
          %s519 = scalar_select %p518, %s32, 1
          %s520 = scalar_lea.vmem %s7, %s519
        $region48: #{tpu_custom_call.1} parent=31 // pred_fallthru
          _
        // Predicated region
        $region49: #{tpu_custom_call.1} parent=31 // pred_check
          %p521 = pneg %p264
        $region50: #{tpu_custom_call.1} parent=31 // pred_check_branch
          %523 = sbr.rel (%p521) target = $region52
        $region51: #{tpu_custom_call.1} parent=31 // pred_region
          %s524 = sand.u32 %s24, 1
          %s525 = scalar_lea.sflag [#allocation3], %s524
          %s526 = sand.u32 %s254, 1
          %s527 = smul.addr %s526, 32
          %s528 = scalar_lea.vmem [#allocation9], %s527
          %s530 = ssub.s32 512, 512
          %531 = vsyncadd %s525, %s530
          %s532 = smul.addr %s32, 4
          %s533 = smul.addr %s532, 128
          %s534 = scalar_lea.hbm %s8, %s533
          %s535 = sshll.u32 %s528, 4
          %s536 = int_to_ptr.vmem [resolvable:$true] %s535
          %541 = dma.hbm_to_vmem [thread:$0]  %s534, 512, %s536, %s525, 128, 128, 8
        $region52: #{tpu_custom_call.1} parent=31 // pred_fallthru
          _
        // Predicated region
        $region53: #{tpu_custom_call.1} parent=31 // pred_check
          %p542 = pneg %p290
        $region54: #{tpu_custom_call.1} parent=31 // pred_check_branch
          %544 = sbr.rel (%p542) target = $region56
        $region55: #{tpu_custom_call.1} parent=31 // pred_region
          %p545 = scmp.lt.s32.totalorder %s32, 1
          %s546 = scalar_select %p545, %s32, 1
          %s547 = scalar_lea.vmem %s9, %s546
        $region56: #{tpu_custom_call.1} parent=31 // pred_fallthru
          _
        // Predicated region
        $region57: #{tpu_custom_call.1} parent=31 // pred_check
          %p548 = pneg %p316
        $region58: #{tpu_custom_call.1} parent=31 // pred_check_branch
          %550 = sbr.rel (%p548) target = $region60
        $region59: #{tpu_custom_call.1} parent=31 // pred_region
          %s551 = sand.u32 %s24, 1
          %s552 = scalar_lea.sflag [#allocation3], %s551
          %s553 = sand.u32 %s306, 1
          %s554 = smul.addr %s553, 32
          %s555 = scalar_lea.vmem [#allocation10], %s554
          %s557 = ssub.s32 512, 512
          %558 = vsyncadd %s552, %s557
          %s559 = smul.addr %s32, 4
          %s560 = smul.addr %s559, 128
          %s561 = scalar_lea.hbm %s10, %s560
          %s562 = sshll.u32 %s555, 4
          %s563 = int_to_ptr.vmem [resolvable:$true] %s562
          %568 = dma.hbm_to_vmem [thread:$0]  %s561, 512, %s563, %s552, 128, 128, 8
        $region60: #{tpu_custom_call.1} parent=31 // pred_fallthru
          _
        // Predicated region
        $region61: #{tpu_custom_call.1} parent=31 // pred_check
          %p569 = pneg %p342
        $region62: #{tpu_custom_call.1} parent=31 // pred_check_branch
          %571 = sbr.rel (%p569) target = $region64
        $region63: #{tpu_custom_call.1} parent=31 // pred_region
          %p572 = scmp.lt.s32.totalorder %s32, 1
          %s573 = scalar_select %p572, %s32, 1
          %s574 = scalar_lea.vmem %s11, %s573
        $region64: #{tpu_custom_call.1} parent=31 // pred_fallthru
          _
      $region32: #{tpu_custom_call.1} parent=5 // pred_fallthru
        _
      %p575 = scmp.le.s32.totalorder 1, %s24
      %p576 = scmp.lt.s32.totalorder %s24, 3
      %p577 = pnand %p575, %p576
      %p578 = pneg %p577
      // Predicated region
      $region65: #{tpu_custom_call.1} parent=5 // pred_check
        _
      $region66: #{tpu_custom_call.1} parent=5 // pred_check_branch
        %580 = sbr.rel (%p577) target = $region68
      $region67: #{tpu_custom_call.1} parent=5 // pred_region
        %s581 = ssub.s32 %s24, 1
        // Predicated region
        $region69: #{tpu_custom_call.1} parent=67 // pred_check
          %p582 = pneg %p62
        $region70: #{tpu_custom_call.1} parent=67 // pred_check_branch
          %584 = sbr.rel (%p582) target = $region72
        $region71: #{tpu_custom_call.1} parent=67 // pred_region
          %585 = dma.done [#allocation3], 256
        $region72: #{tpu_custom_call.1} parent=67 // pred_fallthru
          _
        // Predicated region
        $region73: #{tpu_custom_call.1} parent=67 // pred_check
          %p586 = pneg %p88
        $region74: #{tpu_custom_call.1} parent=67 // pred_check_branch
          %588 = sbr.rel (%p586) target = $region76
        $region75: #{tpu_custom_call.1} parent=67 // pred_region
          %589 = dma.done [#allocation6], 256
        $region76: #{tpu_custom_call.1} parent=67 // pred_fallthru
          _
        %s590 = sand.u32 %s29, 1
        %s591 = scalar_lea.sflag [#allocation3], %s590
        %s592 = sand.u32 %s153, 1
        %s593 = smul.addr %s592, 32
        %s594 = scalar_lea.vmem [#allocation7], %s593
        // Predicated region
        $region77: #{tpu_custom_call.1} parent=67 // pred_check
          %p595 = pneg %p166
        $region78: #{tpu_custom_call.1} parent=67 // pred_check_branch
          %597 = sbr.rel (%p595) target = $region80
        $region79: #{tpu_custom_call.1} parent=67 // pred_region
          %598 = dma.done %s591, 512
        $region80: #{tpu_custom_call.1} parent=67 // pred_fallthru
          _
        %s599 = sand.u32 %s29, 1
        %s600 = scalar_lea.sflag [#allocation3], %s599
        %s601 = sand.u32 %s205, 1
        %s602 = smul.addr %s601, 32
        %s603 = scalar_lea.vmem [#allocation8], %s602
        // Predicated region
        $region81: #{tpu_custom_call.1} parent=67 // pred_check
          %p604 = pneg %p218
        $region82: #{tpu_custom_call.1} parent=67 // pred_check_branch
          %606 = sbr.rel (%p604) target = $region84
        $region83: #{tpu_custom_call.1} parent=67 // pred_region
          %607 = dma.done %s600, 512
        $region84: #{tpu_custom_call.1} parent=67 // pred_fallthru
          _
        %s608 = sand.u32 %s29, 1
        %s609 = scalar_lea.sflag [#allocation3], %s608
        %s610 = sand.u32 %s257, 1
        %s611 = smul.addr %s610, 32
        %s612 = scalar_lea.vmem [#allocation9], %s611
        // Predicated region
        $region85: #{tpu_custom_call.1} parent=67 // pred_check
          %p613 = pneg %p270
        $region86: #{tpu_custom_call.1} parent=67 // pred_check_branch
          %615 = sbr.rel (%p613) target = $region88
        $region87: #{tpu_custom_call.1} parent=67 // pred_region
          %616 = dma.done %s609, 512
        $region88: #{tpu_custom_call.1} parent=67 // pred_fallthru
          _
        %s617 = sand.u32 %s29, 1
        %s618 = scalar_lea.sflag [#allocation3], %s617
        %s619 = sand.u32 %s309, 1
        %s620 = smul.addr %s619, 32
        %s621 = scalar_lea.vmem [#allocation10], %s620
        // Predicated region
        $region89: #{tpu_custom_call.1} parent=67 // pred_check
          %p622 = pneg %p322
        $region90: #{tpu_custom_call.1} parent=67 // pred_check_branch
          %624 = sbr.rel (%p622) target = $region92
        $region91: #{tpu_custom_call.1} parent=67 // pred_region
          %625 = dma.done %s618, 512
        $region92: #{tpu_custom_call.1} parent=67 // pred_fallthru
          _
        %p626 = pneg %p62
        %p627 = pneg %p59
        %p628 = pneg %p88
        %p629 = pneg %p85
        %s630 = smul.u32 2, %s33
        %p631 = scmp.lt.s32.totalorder %s630, 1
        %s632 = scalar_select %p631, %s630, 1
        %s633 = scalar_lea.vmem %s2, %s632
        %p634 = pneg %p114
        %p635 = pneg %p111
        %s636 = smul.u32 2, %s33
        %p637 = scmp.lt.s32.totalorder %s636, 1
        %s638 = scalar_select %p637, %s636, 1
        %s639 = scalar_lea.vmem %s3, %s638
        %p640 = pneg %p140
        %p641 = pneg %p137
        %s642 = sand.u32 %s29, 1
        %s643 = scalar_lea.sflag [#allocation3], %s642
        %s644 = sand.u32 %s153, 1
        %s645 = smul.addr %s644, 32
        %s646 = scalar_lea.vmem [#allocation7], %s645
        %p647 = pneg %p166
        %p648 = pneg %p163
        %p649 = scmp.lt.s32.totalorder %s34, 1
        %s650 = scalar_select %p649, %s34, 1
        %s651 = scalar_lea.vmem %s5, %s650
        %p652 = pneg %p192
        %p653 = pneg %p189
        %s654 = sand.u32 %s29, 1
        %s655 = scalar_lea.sflag [#allocation3], %s654
        %s656 = sand.u32 %s205, 1
        %s657 = smul.addr %s656, 32
        %s658 = scalar_lea.vmem [#allocation8], %s657
        %p659 = pneg %p218
        %p660 = pneg %p215
        %p661 = scmp.lt.s32.totalorder %s34, 1
        %s662 = scalar_select %p661, %s34, 1
        %s663 = scalar_lea.vmem %s7, %s662
        %p664 = pneg %p244
        %p665 = pneg %p241
        %s666 = sand.u32 %s29, 1
        %s667 = scalar_lea.sflag [#allocation3], %s666
        %s668 = sand.u32 %s257, 1
        %s669 = smul.addr %s668, 32
        %s670 = scalar_lea.vmem [#allocation9], %s669
        %p671 = pneg %p270
        %p672 = pneg %p267
        %p673 = scmp.lt.s32.totalorder %s34, 1
        %s674 = scalar_select %p673, %s34, 1
        %s675 = scalar_lea.vmem %s9, %s674
        %p676 = pneg %p296
        %p677 = pneg %p293
        %s678 = sand.u32 %s29, 1
        %s679 = scalar_lea.sflag [#allocation3], %s678
        %s680 = sand.u32 %s309, 1
        %s681 = smul.addr %s680, 32
        %s682 = scalar_lea.vmem [#allocation10], %s681
        %p683 = pneg %p322
        %p684 = pneg %p319
        %p685 = scmp.lt.s32.totalorder %s34, 1
        %s686 = scalar_select %p685, %s34, 1
        %s687 = scalar_lea.vmem %s11, %s686
        %p688 = pneg %p348
        %p689 = pneg %p345
        %p690 = pneg %p374
        %p691 = pneg %p371
        %p692 = pneg %p400
        %p693 = pneg %p397
        %s694 = smul.u32 2, %s33
        %s695 = smul.u32 2, %s33
        %s696 = smul.u32 2, %s33
        %p697 = scmp.lt.s32.totalorder %s696, 1
        %s698 = scalar_select %p697, %s696, 1
        %s699 = scalar_lea.vmem %s2, %s698
        %s700 = smul.u32 2, %s33
        %s701 = smul.u32 2, %s33
        %p702 = scmp.lt.s32.totalorder %s701, 1
        %s703 = scalar_select %p702, %s701, 1
        %s704 = scalar_lea.vmem %s3, %s703
        %s705 = smul.u32 2, %s33
        %p706 = scmp.lt.s32.totalorder %s34, 1
        %s707 = scalar_select %p706, %s34, 1
        %s708 = scalar_lea.vmem %s5, %s707
        %p709 = scmp.lt.s32.totalorder %s34, 1
        %s710 = scalar_select %p709, %s34, 1
        %s711 = scalar_lea.vmem %s7, %s710
        %p712 = scmp.lt.s32.totalorder %s34, 1
        %s713 = scalar_select %p712, %s34, 1
        %s714 = scalar_lea.vmem %s9, %s713
        %p715 = scmp.lt.s32.totalorder %s34, 1
        %s716 = scalar_select %p715, %s34, 1
        %s717 = scalar_lea.vmem %s11, %s716
        %s718 = smul.u32 2, %s33
        %s719 = smul.u32 2, %s33
        %p721 = scmp.eq.s32.totalorder %s34, 0
        // Predicated region
        $region93: #{tpu_custom_call.1} parent=67 // pred_check
          %p722 = pneg %p721
        $region94: #{tpu_custom_call.1} parent=67 // pred_check_branch
          %724 = sbr.rel (%p722) target = $region96
        $region95: #{tpu_custom_call.1} parent=67 // pred_region
          %v725 = vld [vmem:[#allocation2] sm:$0xff]
          %v726 = vld [vmem:[#allocation2 + $0x8] sm:$0xff]
          %vm727 = vcmask 261120
          %728 = vst.msk [vmem:[#allocation11] sm:$0xff] %vm727, %v725
          %729 = vst.msk [vmem:[#allocation11 + $0x8] sm:$0xff] %vm727, %v726
          %v730 = vld [vmem:[#allocation5] sm:$0xff]
          %v731 = vld [vmem:[#allocation5 + $0x8] sm:$0xff]
          %732 = vst.msk [vmem:[#allocation12] sm:$0xff] %vm727, %v730
          %733 = vst.msk [vmem:[#allocation12 + $0x8] sm:$0xff] %vm727, %v731
        $region96: #{tpu_custom_call.1} parent=67 // pred_fallthru
          _
        %v734 = vld [vmem:[#allocation11] sm:$0xff]
        %v735 = vld [vmem:[#allocation11 + $0x8] sm:$0xff]
        %v736 = vld [vmem:[#allocation12] sm:$0xff]
        %v737 = vld [vmem:[#allocation12 + $0x8] sm:$0xff]
        %v738 = vpack.c.bf16 %v735, %v734
        %v739 = vpack.c.bf16 %v737, %v736
        %v740 = vld [vmem:[%s594] sm:$0xff]
        %v741 = vld [vmem:[%s594 + $0x8] sm:$0xff]
        %v742 = vld [vmem:[%s594 + $0x10] sm:$0xff]
        %v743 = vld [vmem:[%s594 + $0x18] sm:$0xff]
        %v744 = vpack.c.bf16 %v741, %v740
        %v745 = vpack.c.bf16 %v743, %v742
        %v746 = vld [vmem:[%s603] sm:$0xff]
        %v747 = vld [vmem:[%s603 + $0x8] sm:$0xff]
        %v748 = vld [vmem:[%s603 + $0x10] sm:$0xff]
        %v749 = vld [vmem:[%s603 + $0x18] sm:$0xff]
        %v750 = vpack.c.bf16 %v747, %v746
        %v751 = vpack.c.bf16 %v749, %v748
        %v752 = vld [vmem:[%s612] sm:$0xff]
        %v753 = vld [vmem:[%s612 + $0x8] sm:$0xff]
        %v754 = vld [vmem:[%s612 + $0x10] sm:$0xff]
        %v755 = vld [vmem:[%s612 + $0x18] sm:$0xff]
        %v756 = vpack.c.bf16 %v753, %v752
        %v757 = vpack.c.bf16 %v755, %v754
        %v758 = vld [vmem:[%s621] sm:$0xff]
        %v759 = vld [vmem:[%s621 + $0x8] sm:$0xff]
        %v760 = vld [vmem:[%s621 + $0x10] sm:$0xff]
        %v761 = vld [vmem:[%s621 + $0x18] sm:$0xff]
        %v762 = vpack.c.bf16 %v759, %v758
        %v763 = vpack.c.bf16 %v761, %v760
        %v764 = vld [vmem:[%s708] sm:$0x1]
        %v765 = vld [vmem:[%s711] sm:$0x1]
        %v766 = vld [vmem:[%s714] sm:$0x1]
        %v767 = vld [vmem:[%s717] sm:$0x1]
        %v769 = vlaneseq
        %v770 = vshrl.u32 %v769, 7
        %v771 = vsub.s32 0, %v770
        %v772 = vrot.slane %v764, %v771
        %vm774 = vcmask 261120
        %v776 = vsel %vm774, %v738, 0
        %778 = vmatprep.subr.bf16.mxu0 0
        %779 = vmatpush1.bf16.msra.mxu0 0
        %780 = vmatprep.subr.bf16.mxu0 0
        %781 = vmatpush1.bf16.msra.mxu0 0
        %782 = vmatprep.subr.bf16.mxu0 0
        %783 = vmatpush1.bf16.msra.mxu0 0
        %784 = vmatprep.subr.bf16.mxu0 0
        %785 = vmatpush1.bf16.msra.mxu0 0
        %786 = vmatprep.subr.bf16.mxu0 0
        %787 = vmatpush1.bf16.msra.mxu0 0
        %788 = vmatprep.subr.bf16.mxu0 0
        %789 = vmatpush1.bf16.msra.mxu0 0
        %790 = vmatprep.subr.bf16.mxu0 0
        %791 = vmatpush1.bf16.msra.mxu0 %v745
        %792 = vmatprep.subr.bf16.mxu0 0
        %793 = vmatpush1.bf16.msra.mxu0 %v744
        %794 = vmatprep.subr.bf16.mxu0 0
        %795 = vmatpush2.bf16.msra.mxu0 0
        %796 = vmatprep.subr.bf16.mxu0 0
        %797 = vmatpush2.bf16.msra.mxu0 0
        %798 = vmatprep.subr.bf16.mxu0 0
        %799 = vmatpush2.bf16.msra.mxu0 0
        %800 = vmatprep.subr.bf16.mxu0 0
        %801 = vmatpush2.bf16.msra.mxu0 0
        %802 = vmatprep.subr.bf16.mxu0 0
        %803 = vmatpush2.bf16.msra.mxu0 0
        %804 = vmatprep.subr.bf16.mxu0 0
        %805 = vmatpush2.bf16.msra.mxu0 0
        %806 = vmatprep.subr.bf16.mxu0 0
        %807 = vmatpush2.bf16.msra.mxu0 0
        %808 = vmatprep.subr.bf16.mxu0 0
        %809 = vmatpush2.bf16.msra.mxu0 0
        %810 = vmatprep.mubr.bf16.mxu0 0
        %811 = vmatmul.mubr.bf16.gmra.mxu0 %v776
        %v812 = vpop.f32.mrf.mxu0
        %v813 = vadd.f32 %v772, %v812
        %v814 = vpop.f32.mrf.mxu0
        %v815 = vpop.f32.mrf.mxu0
        %v816 = vadd.f32 %v772, %v815
        %v817 = vpop.f32.mrf.mxu0
        %818 = vdwg.mxu0
        %v820 = vlaneseq
        %v821 = vshrl.u32 %v820, 7
        %v822 = vsub.s32 0, %v821
        %v823 = vrot.slane %v765, %v822
        %v826 = vsel %vm774, %v739, 0
        %828 = vmatprep.subr.bf16.mxu0 0
        %829 = vmatpush1.bf16.msra.mxu0 0
        %830 = vmatprep.subr.bf16.mxu0 0
        %831 = vmatpush1.bf16.msra.mxu0 0
        %832 = vmatprep.subr.bf16.mxu0 0
        %833 = vmatpush1.bf16.msra.mxu0 0
        %834 = vmatprep.subr.bf16.mxu0 0
        %835 = vmatpush1.bf16.msra.mxu0 0
        %836 = vmatprep.subr.bf16.mxu0 0
        %837 = vmatpush1.bf16.msra.mxu0 0
        %838 = vmatprep.subr.bf16.mxu0 0
        %839 = vmatpush1.bf16.msra.mxu0 0
        %840 = vmatprep.subr.bf16.mxu0 0
        %841 = vmatpush1.bf16.msra.mxu0 %v751
        %842 = vmatprep.subr.bf16.mxu0 0
        %843 = vmatpush1.bf16.msra.mxu0 %v750
        %844 = vmatprep.subr.bf16.mxu0 0
        %845 = vmatpush2.bf16.msra.mxu0 0
        %846 = vmatprep.subr.bf16.mxu0 0
        %847 = vmatpush2.bf16.msra.mxu0 0
        %848 = vmatprep.subr.bf16.mxu0 0
        %849 = vmatpush2.bf16.msra.mxu0 0
        %850 = vmatprep.subr.bf16.mxu0 0
        %851 = vmatpush2.bf16.msra.mxu0 0
        %852 = vmatprep.subr.bf16.mxu0 0
        %853 = vmatpush2.bf16.msra.mxu0 0
        %854 = vmatprep.subr.bf16.mxu0 0
        %855 = vmatpush2.bf16.msra.mxu0 0
        %856 = vmatprep.subr.bf16.mxu0 0
        %857 = vmatpush2.bf16.msra.mxu0 0
        %858 = vmatprep.subr.bf16.mxu0 0
        %859 = vmatpush2.bf16.msra.mxu0 0
        %860 = vmatprep.mubr.bf16.mxu0 0
        %861 = vmatmul.mubr.bf16.gmra.mxu0 %v826
        %v862 = vpop.f32.mrf.mxu0
        %v863 = vadd.f32 %v823, %v862
        %v864 = vpop.f32.mrf.mxu0
        %v865 = vpop.f32.mrf.mxu0
        %v866 = vadd.f32 %v823, %v865
        %v867 = vpop.f32.mrf.mxu0
        %868 = vdwg.mxu0
        %v869 = vld [vmem:[%s699] sm:$0x1]
        %v870 = vld [vmem:[%s699 + $0x1] sm:$0x1]
        %v871 = vld [vmem:[%s704] sm:$0x1]
        %v872 = vld [vmem:[%s704 + $0x1] sm:$0x1]
        %v873 = vpack.c.bf16 %v813, %v813
        %v874 = vpack.c.bf16 %v863, %v863
        %v876 = vsel %vm774, %v873, 0
        %v879 = vsel %vm774, %v874, 0
        %881 = vmatprep.subr.bf16.mxu0 0
        %882 = vmatpush1.bf16.xpose.msra.mxu0 0
        %883 = vmatprep.subr.bf16.mxu0 0
        %884 = vmatpush1.bf16.xpose.msra.mxu0 0
        %885 = vmatprep.subr.bf16.mxu0 0
        %886 = vmatpush1.bf16.xpose.msra.mxu0 0
        %887 = vmatprep.subr.bf16.mxu0 0
        %888 = vmatpush1.bf16.xpose.msra.mxu0 0
        %889 = vmatprep.subr.bf16.mxu0 0
        %890 = vmatpush1.bf16.xpose.msra.mxu0 0
        %891 = vmatprep.subr.bf16.mxu0 0
        %892 = vmatpush1.bf16.xpose.msra.mxu0 0
        %893 = vmatprep.subr.bf16.mxu0 0
        %894 = vmatpush1.bf16.xpose.msra.mxu0 0
        %895 = vmatprep.subr.bf16.mxu0 0
        %896 = vmatpush1.bf16.xpose.msra.mxu0 %v879
        %897 = vmatprep.subr.bf16.mxu0 0
        %898 = vmatpush2.bf16.xpose.msra.mxu0 0
        %899 = vmatprep.subr.bf16.mxu0 0
        %900 = vmatpush2.bf16.xpose.msra.mxu0 0
        %901 = vmatprep.subr.bf16.mxu0 0
        %902 = vmatpush2.bf16.xpose.msra.mxu0 0
        %903 = vmatprep.subr.bf16.mxu0 0
        %904 = vmatpush2.bf16.xpose.msra.mxu0 0
        %905 = vmatprep.subr.bf16.mxu0 0
        %906 = vmatpush2.bf16.xpose.msra.mxu0 0
        %907 = vmatprep.subr.bf16.mxu0 0
        %908 = vmatpush2.bf16.xpose.msra.mxu0 0
        %909 = vmatprep.subr.bf16.mxu0 0
        %910 = vmatpush2.bf16.xpose.msra.mxu0 0
        %911 = vmatprep.subr.bf16.mxu0 0
        %912 = vmatpush2.bf16.xpose.msra.mxu0 0
        %913 = vmatprep.mubr.bf16.mxu0 0
        %914 = vmatmul.mubr.bf16.gmra.mxu0 %v876
        %v915 = vpop.f32.mrf.mxu0
        %v916 = vadd.f32 0.0, %v915
        %v917 = vpop.f32.mrf.mxu0
        %v918 = vpop.f32.mrf.mxu0
        %v919 = vpop.f32.mrf.mxu0
        %920 = vdwg.mxu0
        %v921 = vmul.f32 %v813, %v813
        %v922 = vsel %vm774, %v921, 0.0
        %923 = vadd.xlane.f32.xlu0 %v922
        %v924 = vpop.xlane.xlu0 %923
        %v925 = vrsqrt.pop %v924
        %v926 = vmul.f32 %v924, %v925
        %vm927 = vcmp.eq.f32.partialorder %v924, inf
        %v928 = vsel %vm927, %v924, %v926
        %vm929 = vcmp.eq.f32.partialorder %v924, 0.0
        %v930 = vand.u32 %v924, 2147483648
        %v931 = vsel %vm929, %v930, %v928
        %v932 = vmul.f32 %v863, %v863
        %v933 = vsel %vm774, %v932, 0.0
        %934 = vadd.xlane.f32.xlu0 %v933
        %v935 = vpop.xlane.xlu0 %934
        %v936 = vrsqrt.pop %v935
        %v937 = vmul.f32 %v935, %v936
        %vm938 = vcmp.eq.f32.partialorder %v935, inf
        %v939 = vsel %vm938, %v935, %v937
        %vm940 = vcmp.eq.f32.partialorder %v935, 0.0
        %v941 = vand.u32 %v935, 2147483648
        %v942 = vsel %vm940, %v941, %v939
        %943 = vxpose.xlu0.b32.start [1/16] %v942, 128
        %944 = vxpose.xlu0.b32.cont [2/16] 0.0, 128
        %945 = vxpose.xlu0.b32.cont [3/16] 0.0, 128
        %946 = vxpose.xlu0.b32.cont [4/16] 0.0, 128
        %947 = vxpose.xlu0.b32.cont [5/16] 0.0, 128
        %948 = vxpose.xlu0.b32.cont [6/16] 0.0, 128
        %949 = vxpose.xlu0.b32.cont [7/16] 0.0, 128
        %950 = vxpose.xlu0.b32.cont [8/16] 0.0, 128
        %951 = vxpose.xlu0.b32.cont [9/16] 0.0, 128
        %952 = vxpose.xlu0.b32.cont [10/16] 0.0, 128
        %953 = vxpose.xlu0.b32.cont [11/16] 0.0, 128
        %954 = vxpose.xlu0.b32.cont [12/16] 0.0, 128
        %955 = vxpose.xlu0.b32.cont [13/16] 0.0, 128
        %956 = vxpose.xlu0.b32.cont [14/16] 0.0, 128
        %957 = vxpose.xlu0.b32.cont [15/16] 0.0, 128
        %958 = vxpose.xlu0.b32.end [16/16] 0.0, 128
        %v959 = vpop.trf.xlu0
        %v960 = vpop.trf.xlu0
        %v961 = vpop.trf.xlu0
        %v962 = vpop.trf.xlu0
        %v963 = vpop.trf.xlu0
        %v964 = vpop.trf.xlu0
        %v965 = vpop.trf.xlu0
        %v966 = vpop.trf.xlu0
        %v967 = vpop.trf.xlu0
        %v968 = vpop.trf.xlu0
        %v969 = vpop.trf.xlu0
        %v970 = vpop.trf.xlu0
        %v971 = vpop.trf.xlu0
        %v972 = vpop.trf.xlu0
        %v973 = vpop.trf.xlu0
        %v974 = vpop.trf.xlu0
        %v975 = vlaneseq
        %v976 = vshrl.u32 %v975, 7
        %v977 = vsub.s32 0, %v976
        %v978 = vrot.slane %v959, %v977
        %v979 = vmul.f32 %v931, %v978
        %v980 = vmax.f32 %v979, 1e-08
        %v981 = vrcp.pop %v980
        %v982 = vmul.f32 %v916, %v981
        %v984 = vlaneseq
        %v985 = vshrl.u32 %v984, 7
        %v986 = vsub.s32 0, %v985
        %v987 = vrot.slane %v871, %v986
        %v989 = vadd.f32 %v982, %v987
        %vm990 = vcmask 64512
        %v991 = vsel %vm990, %v989, -inf
        %992 = vmax.xlane.f32.xlu0 %v991
        %v993 = vpop.xlane.xlu0 %992
        %v994 = vsub.f32 %v989, %v993
        %v995 = vmul.f32 %v994, 1.442695
        %v996 = vpow.pop %v995
        %v997 = vsel %vm990, %v996, 0.0
        %998 = vadd.xlane.f32.xlu0 %v997
        %v999 = vpop.xlane.xlu0 %998
        %v1000 = vrcp.pop %v999
        %v1001 = vmul.f32 %v996, %v1000
        %v1002 = vpack.c.bf16 %v1001, %v1001
        %v1003 = vpack.c.bf16 %v736, %v736
        %v1005 = vsel %vm990, %v1002, 0
        %vm1007 = vcmask 1043456
        %v1009 = vsel %vm1007, %v1003, 0
        %1011 = vmatprep.subr.bf16.mxu0 0
        %1012 = vmatpush1.bf16.msra.mxu0 0
        %1013 = vmatprep.subr.bf16.mxu0 0
        %1014 = vmatpush1.bf16.msra.mxu0 0
        %1015 = vmatprep.subr.bf16.mxu0 0
        %1016 = vmatpush1.bf16.msra.mxu0 0
        %1017 = vmatprep.subr.bf16.mxu0 0
        %1018 = vmatpush1.bf16.msra.mxu0 0
        %1019 = vmatprep.subr.bf16.mxu0 0
        %1020 = vmatpush1.bf16.msra.mxu0 0
        %1021 = vmatprep.subr.bf16.mxu0 0
        %1022 = vmatpush1.bf16.msra.mxu0 0
        %1023 = vmatprep.subr.bf16.mxu0 0
        %1024 = vmatpush1.bf16.msra.mxu0 0
        %1025 = vmatprep.subr.bf16.mxu0 0
        %1026 = vmatpush1.bf16.msra.mxu0 %v1009
        %1027 = vmatprep.subr.bf16.mxu0 0
        %1028 = vmatpush2.bf16.msra.mxu0 0
        %1029 = vmatprep.subr.bf16.mxu0 0
        %1030 = vmatpush2.bf16.msra.mxu0 0
        %1031 = vmatprep.subr.bf16.mxu0 0
        %1032 = vmatpush2.bf16.msra.mxu0 0
        %1033 = vmatprep.subr.bf16.mxu0 0
        %1034 = vmatpush2.bf16.msra.mxu0 0
        %1035 = vmatprep.subr.bf16.mxu0 0
        %1036 = vmatpush2.bf16.msra.mxu0 0
        %1037 = vmatprep.subr.bf16.mxu0 0
        %1038 = vmatpush2.bf16.msra.mxu0 0
        %1039 = vmatprep.subr.bf16.mxu0 0
        %1040 = vmatpush2.bf16.msra.mxu0 0
        %1041 = vmatprep.subr.bf16.mxu0 0
        %1042 = vmatpush2.bf16.msra.mxu0 0
        %1043 = vmatprep.mubr.bf16.mxu0 0
        %1044 = vmatmul.mubr.bf16.gmra.mxu0 %v1005
        %v1045 = vpop.f32.mrf.mxu0
        %v1046 = vadd.f32 0.0, %v1045
        %v1047 = vpop.f32.mrf.mxu0
        %v1048 = vpop.f32.mrf.mxu0
        %v1049 = vpop.f32.mrf.mxu0
        %1050 = vdwg.mxu0
        %1051 = vxpose.xlu0.b32.start [1/16] %v982, 128
        %1052 = vxpose.xlu0.b32.cont [2/16] 0.0, 128
        %1053 = vxpose.xlu0.b32.cont [3/16] 0.0, 128
        %1054 = vxpose.xlu0.b32.cont [4/16] 0.0, 128
        %1055 = vxpose.xlu0.b32.cont [5/16] 0.0, 128
        %1056 = vxpose.xlu0.b32.cont [6/16] 0.0, 128
        %1057 = vxpose.xlu0.b32.cont [7/16] 0.0, 128
        %1058 = vxpose.xlu0.b32.cont [8/16] 0.0, 128
        %1059 = vxpose.xlu0.b32.cont [9/16] 0.0, 128
        %1060 = vxpose.xlu0.b32.cont [10/16] 0.0, 128
        %1061 = vxpose.xlu0.b32.cont [11/16] 0.0, 128
        %1062 = vxpose.xlu0.b32.cont [12/16] 0.0, 128
        %1063 = vxpose.xlu0.b32.cont [13/16] 0.0, 128
        %1064 = vxpose.xlu0.b32.cont [14/16] 0.0, 128
        %1065 = vxpose.xlu0.b32.cont [15/16] 0.0, 128
        %1066 = vxpose.xlu0.b32.end [16/16] 0.0, 128
        %v1067 = vpop.trf.xlu0
        %v1068 = vpop.trf.xlu0
        %v1069 = vpop.trf.xlu0
        %v1070 = vpop.trf.xlu0
        %v1071 = vpop.trf.xlu0
        %v1072 = vpop.trf.xlu0
        %v1073 = vpop.trf.xlu0
        %v1074 = vpop.trf.xlu0
        %v1075 = vpop.trf.xlu0
        %v1076 = vpop.trf.xlu0
        %v1077 = vpop.trf.xlu0
        %v1078 = vpop.trf.xlu0
        %v1079 = vpop.trf.xlu0
        %v1080 = vpop.trf.xlu0
        %v1081 = vpop.trf.xlu0
        %v1082 = vpop.trf.xlu0
        %v1084 = vlaneseq
        %v1085 = vshrl.u32 %v1084, 7
        %v1086 = vsub.s32 0, %v1085
        %v1087 = vrot.slane %v869, %v1086
        %v1089 = vadd.f32 %v1067, %v1087
        %v1090 = vsel %vm990, %v1089, -inf
        %1091 = vmax.xlane.f32.xlu0 %v1090
        %v1092 = vpop.xlane.xlu0 %1091
        %v1093 = vsub.f32 %v1089, %v1092
        %v1094 = vmul.f32 %v1093, 1.442695
        %v1095 = vpow.pop %v1094
        %v1096 = vsel %vm990, %v1095, 0.0
        %1097 = vadd.xlane.f32.xlu0 %v1096
        %v1098 = vpop.xlane.xlu0 %1097
        %v1099 = vrcp.pop %v1098
        %v1100 = vmul.f32 %v1095, %v1099
        %v1101 = vpack.c.bf16 %v1100, %v1100
        %v1102 = vpack.c.bf16 %v734, %v734
        %v1104 = vsel %vm990, %v1101, 0
        %v1107 = vsel %vm1007, %v1102, 0
        %1109 = vmatprep.subr.bf16.mxu0 0
        %1110 = vmatpush1.bf16.msra.mxu0 0
        %1111 = vmatprep.subr.bf16.mxu0 0
        %1112 = vmatpush1.bf16.msra.mxu0 0
        %1113 = vmatprep.subr.bf16.mxu0 0
        %1114 = vmatpush1.bf16.msra.mxu0 0
        %1115 = vmatprep.subr.bf16.mxu0 0
        %1116 = vmatpush1.bf16.msra.mxu0 0
        %1117 = vmatprep.subr.bf16.mxu0 0
        %1118 = vmatpush1.bf16.msra.mxu0 0
        %1119 = vmatprep.subr.bf16.mxu0 0
        %1120 = vmatpush1.bf16.msra.mxu0 0
        %1121 = vmatprep.subr.bf16.mxu0 0
        %1122 = vmatpush1.bf16.msra.mxu0 0
        %1123 = vmatprep.subr.bf16.mxu0 0
        %1124 = vmatpush1.bf16.msra.mxu0 %v1107
        %1125 = vmatprep.subr.bf16.mxu0 0
        %1126 = vmatpush2.bf16.msra.mxu0 0
        %1127 = vmatprep.subr.bf16.mxu0 0
        %1128 = vmatpush2.bf16.msra.mxu0 0
        %1129 = vmatprep.subr.bf16.mxu0 0
        %1130 = vmatpush2.bf16.msra.mxu0 0
        %1131 = vmatprep.subr.bf16.mxu0 0
        %1132 = vmatpush2.bf16.msra.mxu0 0
        %1133 = vmatprep.subr.bf16.mxu0 0
        %1134 = vmatpush2.bf16.msra.mxu0 0
        %1135 = vmatprep.subr.bf16.mxu0 0
        %1136 = vmatpush2.bf16.msra.mxu0 0
        %1137 = vmatprep.subr.bf16.mxu0 0
        %1138 = vmatpush2.bf16.msra.mxu0 0
        %1139 = vmatprep.subr.bf16.mxu0 0
        %1140 = vmatpush2.bf16.msra.mxu0 0
        %1141 = vmatprep.mubr.bf16.mxu0 0
        %1142 = vmatmul.mubr.bf16.gmra.mxu0 %v1104
        %v1143 = vpop.f32.mrf.mxu0
        %v1144 = vadd.f32 0.0, %v1143
        %v1145 = vpop.f32.mrf.mxu0
        %v1146 = vpop.f32.mrf.mxu0
        %v1147 = vpop.f32.mrf.mxu0
        %1148 = vdwg.mxu0
        %v1149 = vpack.c.bf16 %v816, %v816
        %v1150 = vpack.c.bf16 %v866, %v866
        %v1152 = vsel %vm774, %v1149, 0
        %v1155 = vsel %vm774, %v1150, 0
        %1157 = vmatprep.subr.bf16.mxu0 0
        %1158 = vmatpush1.bf16.xpose.msra.mxu0 0
        %1159 = vmatprep.subr.bf16.mxu0 0
        %1160 = vmatpush1.bf16.xpose.msra.mxu0 0
        %1161 = vmatprep.subr.bf16.mxu0 0
        %1162 = vmatpush1.bf16.xpose.msra.mxu0 0
        %1163 = vmatprep.subr.bf16.mxu0 0
        %1164 = vmatpush1.bf16.xpose.msra.mxu0 0
        %1165 = vmatprep.subr.bf16.mxu0 0
        %1166 = vmatpush1.bf16.xpose.msra.mxu0 0
        %1167 = vmatprep.subr.bf16.mxu0 0
        %1168 = vmatpush1.bf16.xpose.msra.mxu0 0
        %1169 = vmatprep.subr.bf16.mxu0 0
        %1170 = vmatpush1.bf16.xpose.msra.mxu0 0
        %1171 = vmatprep.subr.bf16.mxu0 0
        %1172 = vmatpush1.bf16.xpose.msra.mxu0 %v1155
        %1173 = vmatprep.subr.bf16.mxu0 0
        %1174 = vmatpush2.bf16.xpose.msra.mxu0 0
        %1175 = vmatprep.subr.bf16.mxu0 0
        %1176 = vmatpush2.bf16.xpose.msra.mxu0 0
        %1177 = vmatprep.subr.bf16.mxu0 0
        %1178 = vmatpush2.bf16.xpose.msra.mxu0 0
        %1179 = vmatprep.subr.bf16.mxu0 0
        %1180 = vmatpush2.bf16.xpose.msra.mxu0 0
        %1181 = vmatprep.subr.bf16.mxu0 0
        %1182 = vmatpush2.bf16.xpose.msra.mxu0 0
        %1183 = vmatprep.subr.bf16.mxu0 0
        %1184 = vmatpush2.bf16.xpose.msra.mxu0 0
        %1185 = vmatprep.subr.bf16.mxu0 0
        %1186 = vmatpush2.bf16.xpose.msra.mxu0 0
        %1187 = vmatprep.subr.bf16.mxu0 0
        %1188 = vmatpush2.bf16.xpose.msra.mxu0 0
        %1189 = vmatprep.mubr.bf16.mxu0 0
        %1190 = vmatmul.mubr.bf16.gmra.mxu0 %v1152
        %v1191 = vpop.f32.mrf.mxu0
        %v1192 = vadd.f32 0.0, %v1191
        %v1193 = vpop.f32.mrf.mxu0
        %v1194 = vpop.f32.mrf.mxu0
        %v1195 = vpop.f32.mrf.mxu0
        %1196 = vdwg.mxu0
        %v1197 = vmul.f32 %v816, %v816
        %v1198 = vsel %vm774, %v1197, 0.0
        %1199 = vadd.xlane.f32.xlu0 %v1198
        %v1200 = vpop.xlane.xlu0 %1199
        %v1201 = vrsqrt.pop %v1200
        %v1202 = vmul.f32 %v1200, %v1201
        %vm1203 = vcmp.eq.f32.partialorder %v1200, inf
        %v1204 = vsel %vm1203, %v1200, %v1202
        %vm1205 = vcmp.eq.f32.partialorder %v1200, 0.0
        %v1206 = vand.u32 %v1200, 2147483648
        %v1207 = vsel %vm1205, %v1206, %v1204
        %v1208 = vmul.f32 %v866, %v866
        %v1209 = vsel %vm774, %v1208, 0.0
        %1210 = vadd.xlane.f32.xlu0 %v1209
        %v1211 = vpop.xlane.xlu0 %1210
        %v1212 = vrsqrt.pop %v1211
        %v1213 = vmul.f32 %v1211, %v1212
        %vm1214 = vcmp.eq.f32.partialorder %v1211, inf
        %v1215 = vsel %vm1214, %v1211, %v1213
        %vm1216 = vcmp.eq.f32.partialorder %v1211, 0.0
        %v1217 = vand.u32 %v1211, 2147483648
        %v1218 = vsel %vm1216, %v1217, %v1215
        %1219 = vxpose.xlu0.b32.start [1/16] %v1218, 128
        %1220 = vxpose.xlu0.b32.cont [2/16] 0.0, 128
        %1221 = vxpose.xlu0.b32.cont [3/16] 0.0, 128
        %1222 = vxpose.xlu0.b32.cont [4/16] 0.0, 128
        %1223 = vxpose.xlu0.b32.cont [5/16] 0.0, 128
        %1224 = vxpose.xlu0.b32.cont [6/16] 0.0, 128
        %1225 = vxpose.xlu0.b32.cont [7/16] 0.0, 128
        %1226 = vxpose.xlu0.b32.cont [8/16] 0.0, 128
        %1227 = vxpose.xlu0.b32.cont [9/16] 0.0, 128
        %1228 = vxpose.xlu0.b32.cont [10/16] 0.0, 128
        %1229 = vxpose.xlu0.b32.cont [11/16] 0.0, 128
        %1230 = vxpose.xlu0.b32.cont [12/16] 0.0, 128
        %1231 = vxpose.xlu0.b32.cont [13/16] 0.0, 128
        %1232 = vxpose.xlu0.b32.cont [14/16] 0.0, 128
        %1233 = vxpose.xlu0.b32.cont [15/16] 0.0, 128
        %1234 = vxpose.xlu0.b32.end [16/16] 0.0, 128
        %v1235 = vpop.trf.xlu0
        %v1236 = vpop.trf.xlu0
        %v1237 = vpop.trf.xlu0
        %v1238 = vpop.trf.xlu0
        %v1239 = vpop.trf.xlu0
        %v1240 = vpop.trf.xlu0
        %v1241 = vpop.trf.xlu0
        %v1242 = vpop.trf.xlu0
        %v1243 = vpop.trf.xlu0
        %v1244 = vpop.trf.xlu0
        %v1245 = vpop.trf.xlu0
        %v1246 = vpop.trf.xlu0
        %v1247 = vpop.trf.xlu0
        %v1248 = vpop.trf.xlu0
        %v1249 = vpop.trf.xlu0
        %v1250 = vpop.trf.xlu0
        %v1251 = vlaneseq
        %v1252 = vshrl.u32 %v1251, 7
        %v1253 = vsub.s32 0, %v1252
        %v1254 = vrot.slane %v1235, %v1253
        %v1255 = vmul.f32 %v1207, %v1254
        %v1256 = vmax.f32 %v1255, 1e-08
        %v1257 = vrcp.pop %v1256
        %v1258 = vmul.f32 %v1192, %v1257
        %v1260 = vlaneseq
        %v1261 = vshrl.u32 %v1260, 7
        %v1262 = vsub.s32 0, %v1261
        %v1263 = vrot.slane %v872, %v1262
        %v1265 = vadd.f32 %v1258, %v1263
        %v1266 = vsel %vm990, %v1265, -inf
        %1267 = vmax.xlane.f32.xlu0 %v1266
        %v1268 = vpop.xlane.xlu0 %1267
        %v1269 = vsub.f32 %v1265, %v1268
        %v1270 = vmul.f32 %v1269, 1.442695
        %v1271 = vpow.pop %v1270
        %v1272 = vsel %vm990, %v1271, 0.0
        %1273 = vadd.xlane.f32.xlu0 %v1272
        %v1274 = vpop.xlane.xlu0 %1273
        %v1275 = vrcp.pop %v1274
        %v1276 = vmul.f32 %v1271, %v1275
        %v1277 = vpack.c.bf16 %v1276, %v1276
        %v1278 = vpack.c.bf16 %v737, %v737
        %v1280 = vsel %vm990, %v1277, 0
        %v1283 = vsel %vm1007, %v1278, 0
        %1285 = vmatprep.subr.bf16.mxu0 0
        %1286 = vmatpush1.bf16.msra.mxu0 0
        %1287 = vmatprep.subr.bf16.mxu0 0
        %1288 = vmatpush1.bf16.msra.mxu0 0
        %1289 = vmatprep.subr.bf16.mxu0 0
        %1290 = vmatpush1.bf16.msra.mxu0 0
        %1291 = vmatprep.subr.bf16.mxu0 0
        %1292 = vmatpush1.bf16.msra.mxu0 0
        %1293 = vmatprep.subr.bf16.mxu0 0
        %1294 = vmatpush1.bf16.msra.mxu0 0
        %1295 = vmatprep.subr.bf16.mxu0 0
        %1296 = vmatpush1.bf16.msra.mxu0 0
        %1297 = vmatprep.subr.bf16.mxu0 0
        %1298 = vmatpush1.bf16.msra.mxu0 0
        %1299 = vmatprep.subr.bf16.mxu0 0
        %1300 = vmatpush1.bf16.msra.mxu0 %v1283
        %1301 = vmatprep.subr.bf16.mxu0 0
        %1302 = vmatpush2.bf16.msra.mxu0 0
        %1303 = vmatprep.subr.bf16.mxu0 0
        %1304 = vmatpush2.bf16.msra.mxu0 0
        %1305 = vmatprep.subr.bf16.mxu0 0
        %1306 = vmatpush2.bf16.msra.mxu0 0
        %1307 = vmatprep.subr.bf16.mxu0 0
        %1308 = vmatpush2.bf16.msra.mxu0 0
        %1309 = vmatprep.subr.bf16.mxu0 0
        %1310 = vmatpush2.bf16.msra.mxu0 0
        %1311 = vmatprep.subr.bf16.mxu0 0
        %1312 = vmatpush2.bf16.msra.mxu0 0
        %1313 = vmatprep.subr.bf16.mxu0 0
        %1314 = vmatpush2.bf16.msra.mxu0 0
        %1315 = vmatprep.subr.bf16.mxu0 0
        %1316 = vmatpush2.bf16.msra.mxu0 0
        %1317 = vmatprep.mubr.bf16.mxu0 0
        %1318 = vmatmul.mubr.bf16.gmra.mxu0 %v1280
        %v1319 = vpop.f32.mrf.mxu0
        %v1320 = vadd.f32 0.0, %v1319
        %v1321 = vpop.f32.mrf.mxu0
        %v1322 = vpop.f32.mrf.mxu0
        %v1323 = vpop.f32.mrf.mxu0
        %1324 = vdwg.mxu0
        %1325 = vxpose.xlu0.b32.start [1/16] %v1258, 128
        %1326 = vxpose.xlu0.b32.cont [2/16] 0.0, 128
        %1327 = vxpose.xlu0.b32.cont [3/16] 0.0, 128
        %1328 = vxpose.xlu0.b32.cont [4/16] 0.0, 128
        %1329 = vxpose.xlu0.b32.cont [5/16] 0.0, 128
        %1330 = vxpose.xlu0.b32.cont [6/16] 0.0, 128
        %1331 = vxpose.xlu0.b32.cont [7/16] 0.0, 128
        %1332 = vxpose.xlu0.b32.cont [8/16] 0.0, 128
        %1333 = vxpose.xlu0.b32.cont [9/16] 0.0, 128
        %1334 = vxpose.xlu0.b32.cont [10/16] 0.0, 128
        %1335 = vxpose.xlu0.b32.cont [11/16] 0.0, 128
        %1336 = vxpose.xlu0.b32.cont [12/16] 0.0, 128
        %1337 = vxpose.xlu0.b32.cont [13/16] 0.0, 128
        %1338 = vxpose.xlu0.b32.cont [14/16] 0.0, 128
        %1339 = vxpose.xlu0.b32.cont [15/16] 0.0, 128
        %1340 = vxpose.xlu0.b32.end [16/16] 0.0, 128
        %v1341 = vpop.trf.xlu0
        %v1342 = vpop.trf.xlu0
        %v1343 = vpop.trf.xlu0
        %v1344 = vpop.trf.xlu0
        %v1345 = vpop.trf.xlu0
        %v1346 = vpop.trf.xlu0
        %v1347 = vpop.trf.xlu0
        %v1348 = vpop.trf.xlu0
        %v1349 = vpop.trf.xlu0
        %v1350 = vpop.trf.xlu0
        %v1351 = vpop.trf.xlu0
        %v1352 = vpop.trf.xlu0
        %v1353 = vpop.trf.xlu0
        %v1354 = vpop.trf.xlu0
        %v1355 = vpop.trf.xlu0
        %v1356 = vpop.trf.xlu0
        %v1358 = vlaneseq
        %v1359 = vshrl.u32 %v1358, 7
        %v1360 = vsub.s32 0, %v1359
        %v1361 = vrot.slane %v870, %v1360
        %v1363 = vadd.f32 %v1341, %v1361
        %v1364 = vsel %vm990, %v1363, -inf
        %1365 = vmax.xlane.f32.xlu0 %v1364
        %v1366 = vpop.xlane.xlu0 %1365
        %v1367 = vsub.f32 %v1363, %v1366
        %v1368 = vmul.f32 %v1367, 1.442695
        %v1369 = vpow.pop %v1368
        %v1370 = vsel %vm990, %v1369, 0.0
        %1371 = vadd.xlane.f32.xlu0 %v1370
        %v1372 = vpop.xlane.xlu0 %1371
        %v1373 = vrcp.pop %v1372
        %v1374 = vmul.f32 %v1369, %v1373
        %v1375 = vpack.c.bf16 %v1374, %v1374
        %v1376 = vpack.c.bf16 %v735, %v735
        %v1378 = vsel %vm990, %v1375, 0
        %v1381 = vsel %vm1007, %v1376, 0
        %1383 = vmatprep.subr.bf16.mxu0 0
        %1384 = vmatpush1.bf16.msra.mxu0 0
        %1385 = vmatprep.subr.bf16.mxu0 0
        %1386 = vmatpush1.bf16.msra.mxu0 0
        %1387 = vmatprep.subr.bf16.mxu0 0
        %1388 = vmatpush1.bf16.msra.mxu0 0
        %1389 = vmatprep.subr.bf16.mxu0 0
        %1390 = vmatpush1.bf16.msra.mxu0 0
        %1391 = vmatprep.subr.bf16.mxu0 0
        %1392 = vmatpush1.bf16.msra.mxu0 0
        %1393 = vmatprep.subr.bf16.mxu0 0
        %1394 = vmatpush1.bf16.msra.mxu0 0
        %1395 = vmatprep.subr.bf16.mxu0 0
        %1396 = vmatpush1.bf16.msra.mxu0 0
        %1397 = vmatprep.subr.bf16.mxu0 0
        %1398 = vmatpush1.bf16.msra.mxu0 %v1381
        %1399 = vmatprep.subr.bf16.mxu0 0
        %1400 = vmatpush2.bf16.msra.mxu0 0
        %1401 = vmatprep.subr.bf16.mxu0 0
        %1402 = vmatpush2.bf16.msra.mxu0 0
        %1403 = vmatprep.subr.bf16.mxu0 0
        %1404 = vmatpush2.bf16.msra.mxu0 0
        %1405 = vmatprep.subr.bf16.mxu0 0
        %1406 = vmatpush2.bf16.msra.mxu0 0
        %1407 = vmatprep.subr.bf16.mxu0 0
        %1408 = vmatpush2.bf16.msra.mxu0 0
        %1409 = vmatprep.subr.bf16.mxu0 0
        %1410 = vmatpush2.bf16.msra.mxu0 0
        %1411 = vmatprep.subr.bf16.mxu0 0
        %1412 = vmatpush2.bf16.msra.mxu0 0
        %1413 = vmatprep.subr.bf16.mxu0 0
        %1414 = vmatpush2.bf16.msra.mxu0 0
        %1415 = vmatprep.mubr.bf16.mxu0 0
        %1416 = vmatmul.mubr.bf16.gmra.mxu0 %v1378
        %v1417 = vpop.f32.mrf.mxu0
        %v1418 = vadd.f32 0.0, %v1417
        %v1419 = vpop.f32.mrf.mxu0
        %v1420 = vpop.f32.mrf.mxu0
        %v1421 = vpop.f32.mrf.mxu0
        %1422 = vdwg.mxu0
        %v1423 = vmul.f32 %v1046, %v734
        %v1424 = vmul.f32 %v1320, %v735
        %v1425 = vxor.u32 %v1423, 2147483648
        %v1426 = vxor.u32 %v1424, 2147483648
        %v1427 = vmul.f32 %v1425, 1.442695
        %v1428 = vpow.pop %v1427
        %v1429 = vmul.f32 %v1426, 1.442695
        %v1430 = vpow.pop %v1429
        %v1431 = vadd.f32 %v1428, 1.0
        %v1432 = vadd.f32 %v1430, 1.0
        %v1433 = vrcp.pop %v1431
        %v1434 = vmul.f32 1.0, %v1433
        %v1435 = vrcp.pop %v1432
        %v1436 = vmul.f32 1.0, %v1435
        %v1437 = vmul.f32 %v1434, %v1046
        %v1438 = vmul.f32 %v1436, %v1320
        %v1439 = vmul.f32 %v1144, %v736
        %v1440 = vmul.f32 %v1418, %v737
        %v1441 = vxor.u32 %v1439, 2147483648
        %v1442 = vxor.u32 %v1440, 2147483648
        %v1443 = vmul.f32 %v1441, 1.442695
        %v1444 = vpow.pop %v1443
        %v1445 = vmul.f32 %v1442, 1.442695
        %v1446 = vpow.pop %v1445
        %v1447 = vadd.f32 %v1444, 1.0
        %v1448 = vadd.f32 %v1446, 1.0
        %v1449 = vrcp.pop %v1447
        %v1450 = vmul.f32 1.0, %v1449
        %v1451 = vrcp.pop %v1448
        %v1452 = vmul.f32 1.0, %v1451
        %v1453 = vmul.f32 %v1450, %v1144
        %v1454 = vmul.f32 %v1452, %v1418
        %v1455 = vpack.c.bf16 %v1438, %v1437
        %v1457 = vlaneseq
        %v1458 = vshrl.u32 %v1457, 7
        %v1459 = vsub.s32 0, %v1458
        %v1460 = vrot.slane %v766, %v1459
        %v1463 = vsel %vm774, %v1455, 0
        %1465 = vmatprep.subr.bf16.mxu0 0
        %1466 = vmatpush1.bf16.msra.mxu0 0
        %1467 = vmatprep.subr.bf16.mxu0 0
        %1468 = vmatpush1.bf16.msra.mxu0 0
        %1469 = vmatprep.subr.bf16.mxu0 0
        %1470 = vmatpush1.bf16.msra.mxu0 0
        %1471 = vmatprep.subr.bf16.mxu0 0
        %1472 = vmatpush1.bf16.msra.mxu0 0
        %1473 = vmatprep.subr.bf16.mxu0 0
        %1474 = vmatpush1.bf16.msra.mxu0 0
        %1475 = vmatprep.subr.bf16.mxu0 0
        %1476 = vmatpush1.bf16.msra.mxu0 0
        %1477 = vmatprep.subr.bf16.mxu0 0
        %1478 = vmatpush1.bf16.msra.mxu0 %v757
        %1479 = vmatprep.subr.bf16.mxu0 0
        %1480 = vmatpush1.bf16.msra.mxu0 %v756
        %1481 = vmatprep.subr.bf16.mxu0 0
        %1482 = vmatpush2.bf16.msra.mxu0 0
        %1483 = vmatprep.subr.bf16.mxu0 0
        %1484 = vmatpush2.bf16.msra.mxu0 0
        %1485 = vmatprep.subr.bf16.mxu0 0
        %1486 = vmatpush2.bf16.msra.mxu0 0
        %1487 = vmatprep.subr.bf16.mxu0 0
        %1488 = vmatpush2.bf16.msra.mxu0 0
        %1489 = vmatprep.subr.bf16.mxu0 0
        %1490 = vmatpush2.bf16.msra.mxu0 0
        %1491 = vmatprep.subr.bf16.mxu0 0
        %1492 = vmatpush2.bf16.msra.mxu0 0
        %1493 = vmatprep.subr.bf16.mxu0 0
        %1494 = vmatpush2.bf16.msra.mxu0 0
        %1495 = vmatprep.subr.bf16.mxu0 0
        %1496 = vmatpush2.bf16.msra.mxu0 0
        %1497 = vmatprep.mubr.bf16.mxu0 0
        %1498 = vmatmul.mubr.bf16.gmra.mxu0 %v1463
        %v1499 = vpop.f32.mrf.mxu0
        %v1500 = vadd.f32 %v1460, %v1499
        %v1501 = vpop.f32.mrf.mxu0
        %v1502 = vpop.f32.mrf.mxu0
        %v1503 = vadd.f32 %v1460, %v1502
        %v1504 = vpop.f32.mrf.mxu0
        %1505 = vdwg.mxu0
        %v1506 = vpack.c.bf16 %v1454, %v1453
        %v1508 = vlaneseq
        %v1509 = vshrl.u32 %v1508, 7
        %v1510 = vsub.s32 0, %v1509
        %v1511 = vrot.slane %v767, %v1510
        %v1514 = vsel %vm774, %v1506, 0
        %1516 = vmatprep.subr.bf16.mxu0 0
        %1517 = vmatpush1.bf16.msra.mxu0 0
        %1518 = vmatprep.subr.bf16.mxu0 0
        %1519 = vmatpush1.bf16.msra.mxu0 0
        %1520 = vmatprep.subr.bf16.mxu0 0
        %1521 = vmatpush1.bf16.msra.mxu0 0
        %1522 = vmatprep.subr.bf16.mxu0 0
        %1523 = vmatpush1.bf16.msra.mxu0 0
        %1524 = vmatprep.subr.bf16.mxu0 0
        %1525 = vmatpush1.bf16.msra.mxu0 0
        %1526 = vmatprep.subr.bf16.mxu0 0
        %1527 = vmatpush1.bf16.msra.mxu0 0
        %1528 = vmatprep.subr.bf16.mxu0 0
        %1529 = vmatpush1.bf16.msra.mxu0 %v763
        %1530 = vmatprep.subr.bf16.mxu0 0
        %1531 = vmatpush1.bf16.msra.mxu0 %v762
        %1532 = vmatprep.subr.bf16.mxu0 0
        %1533 = vmatpush2.bf16.msra.mxu0 0
        %1534 = vmatprep.subr.bf16.mxu0 0
        %1535 = vmatpush2.bf16.msra.mxu0 0
        %1536 = vmatprep.subr.bf16.mxu0 0
        %1537 = vmatpush2.bf16.msra.mxu0 0
        %1538 = vmatprep.subr.bf16.mxu0 0
        %1539 = vmatpush2.bf16.msra.mxu0 0
        %1540 = vmatprep.subr.bf16.mxu0 0
        %1541 = vmatpush2.bf16.msra.mxu0 0
        %1542 = vmatprep.subr.bf16.mxu0 0
        %1543 = vmatpush2.bf16.msra.mxu0 0
        %1544 = vmatprep.subr.bf16.mxu0 0
        %1545 = vmatpush2.bf16.msra.mxu0 0
        %1546 = vmatprep.subr.bf16.mxu0 0
        %1547 = vmatpush2.bf16.msra.mxu0 0
        %1548 = vmatprep.mubr.bf16.mxu0 0
        %1549 = vmatmul.mubr.bf16.gmra.mxu0 %v1514
        %v1550 = vpop.f32.mrf.mxu0
        %v1551 = vadd.f32 %v1511, %v1550
        %v1552 = vpop.f32.mrf.mxu0
        %v1553 = vpop.f32.mrf.mxu0
        %v1554 = vadd.f32 %v1511, %v1553
        %v1555 = vpop.f32.mrf.mxu0
        %1556 = vdwg.mxu0
        %v1557 = vadd.f32 %v1500, %v734
        %v1558 = vadd.f32 %v1503, %v735
        %1559 = vst.msk [vmem:[#allocation11] sm:$0xff] %vm774, %v1557
        %1560 = vst.msk [vmem:[#allocation11 + $0x8] sm:$0xff] %vm774, %v1558
        %v1561 = vadd.f32 %v1551, %v736
        %v1562 = vadd.f32 %v1554, %v737
        %1563 = vst.msk [vmem:[#allocation12] sm:$0xff] %vm774, %v1561
        %1564 = vst.msk [vmem:[#allocation12 + $0x8] sm:$0xff] %vm774, %v1562
        // Predicated region
        $region97: #{tpu_custom_call.1} parent=67 // pred_check
          %p1565 = pneg %p371
        $region98: #{tpu_custom_call.1} parent=67 // pred_check_branch
          %1567 = sbr.rel (%p1565) target = $region100
        $region99: #{tpu_custom_call.1} parent=67 // pred_region
          %s1568 = smul.u32 2, %s33
          %s1570 = ssub.s32 256, 256
          %1571 = vsyncadd [#allocation4], %s1570
          %s1572 = smul.addr %s1568, 128
          %s1573 = scalar_lea.hbm %s12, %s1572
          %s1574 = sshll.u32 [#allocation11], 4
          %s1575 = int_to_ptr.vmem [resolvable:$true] %s1574
          %1580 = dma.vmem_to_hbm [thread:$0]  %s1575, 256, %s1573, [#allocation4], 128, 128, 8
        $region100: #{tpu_custom_call.1} parent=67 // pred_fallthru
          _
        // Predicated region
        $region101: #{tpu_custom_call.1} parent=67 // pred_check
          %p1581 = pneg %p397
        $region102: #{tpu_custom_call.1} parent=67 // pred_check_branch
          %1583 = sbr.rel (%p1581) target = $region104
        $region103: #{tpu_custom_call.1} parent=67 // pred_region
          %s1584 = smul.u32 2, %s33
          %s1586 = ssub.s32 256, 256
          %1587 = vsyncadd [#allocation13], %s1586
          %s1588 = smul.addr %s1584, 128
          %s1589 = scalar_lea.hbm %s13, %s1588
          %s1590 = sshll.u32 [#allocation12], 4
          %s1591 = int_to_ptr.vmem [resolvable:$true] %s1590
          %1596 = dma.vmem_to_hbm [thread:$0]  %s1591, 256, %s1589, [#allocation13], 128, 128, 8
        $region104: #{tpu_custom_call.1} parent=67 // pred_fallthru
          _
        // Predicated region
        $region105: #{tpu_custom_call.1} parent=67 // pred_check
          %p1597 = pneg %p371
        $region106: #{tpu_custom_call.1} parent=67 // pred_check_branch
          %1599 = sbr.rel (%p1597) target = $region108
        $region107: #{tpu_custom_call.1} parent=67 // pred_region
          %1600 = dma.done [#allocation4], 256
        $region108: #{tpu_custom_call.1} parent=67 // pred_fallthru
          _
        // Predicated region
        $region109: #{tpu_custom_call.1} parent=67 // pred_check
          %p1601 = pneg %p397
        $region110: #{tpu_custom_call.1} parent=67 // pred_check_branch
          %1603 = sbr.rel (%p1601) target = $region112
        $region111: #{tpu_custom_call.1} parent=67 // pred_region
          %1604 = dma.done [#allocation13], 256
        $region112: #{tpu_custom_call.1} parent=67 // pred_fallthru
          _
      $region68: #{tpu_custom_call.1} parent=5 // pred_fallthru
        _
      %p1605 = scmp.le.s32.totalorder 2, %s24
      // Predicated region
      $region113: #{tpu_custom_call.1} parent=5 // pred_check
        %p1606 = pneg %p1605
      $region114: #{tpu_custom_call.1} parent=5 // pred_check_branch
        %1608 = sbr.rel (%p1606) target = $region116
      $region115: #{tpu_custom_call.1} parent=5 // pred_region
        %s1609 = ssub.s32 %s24, 2
      $region116: #{tpu_custom_call.1} parent=5 // pred_fallthru
        _
    $region6: #{tpu_custom_call.1} parent=1 // loop_footer
      %s28 = sadd.s32 1, %s24
    $region7: #{tpu_custom_call.1} parent=1 // loop_footer_branch
      %23 = sbr.rel target = $region3
    $region8: #{tpu_custom_call.1} parent=1 // loop_exit
      _
    %1610 = vsyncpa [#allocation3], 1
    %s1611 = scalar_lea.sflag [#allocation3], 1
    %1612 = vsyncpa %s1611, 1
    %1613 = vsyncpa [#allocation6], 1
    %1614 = vsyncpa [#allocation4], 1
    %s1615 = scalar_lea.sflag [#allocation4], 1
    %1616 = vsyncpa %s1615, 1
    %1617 = vsyncpa [#allocation13], 1

</llo_original>
